<compile_context>
chip_gen: v6e
topology: v6e:2x2x1
jax: 0.10.0
libtpu: 0.0.40
codegen_flags: <defaults>
</compile_context>

<pallas_src>
import math
from functools import partial

import jax
import jax.numpy as jnp
from jax.experimental import pallas as pl
from jax.experimental.pallas import tpu as pltpu

BN_EPS = 1e-5
_INV_SQRT2 = 0.7071067811865476


def _pick_row_tile(m):
    """Large row tile (amortizes ~0.35us per grid step) but keep >=2 grid steps when
    possible so both TensorCores get work on v7x."""
    tm = 512
    while tm > 8 and m <= tm:
        tm //= 2
    return max(tm, 8)


# ------------------------------- Pallas kernels --------------------------------------

def _conv_stats_kernel(pat_ref, w_ref, b_ref, conv_ref, stats_ref, *, n_valid):
    """im2col conv matmul + bias; emits per-tile partial channel sums / sums-of-squares."""
    i = pl.program_id(0)
    y = jnp.dot(pat_ref[...], w_ref[...],
                preferred_element_type=jnp.float32) + b_ref[...]
    conv_ref[...] = y

    # Rows that are zero padding of the pixel axis would contribute `bias` to the
    # statistics -> mask them out (n_valid is a trace-time constant).
    tm = y.shape[0]
    row = jax.lax.broadcasted_iota(jnp.int32, y.shape, 0) + i * tm
    valid = (row < n_valid).astype(jnp.float32)
    yv = y * valid
    psum = jnp.sum(yv, axis=0, keepdims=True)        # (1, Cout)
    psumsq = jnp.sum(yv * y, axis=0, keepdims=True)  # (1, Cout) == sum(valid * y^2)
    stats_ref[...] = jnp.concatenate([psum, psumsq], axis=0)[None]  # (1, 2, Cout)


def _bn_gelu_kernel(conv_ref, scale_ref, shift_ref, out_ref):
    """Per-channel affine (batch-norm folded into scale/shift) + exact erf GELU."""
    y = conv_ref[...] * scale_ref[...] + shift_ref[...]
    out_ref[...] = 0.5 * y * (1.0 + jax.lax.erf(y * _INV_SQRT2))


# ------------------------------- wrapper ----------------------------------------------

def _im2col(x, kh_sz, kw_sz, stride, padding, hout, wout):
    """Plain-JAX glue: extract conv patches -> (B*Hout*Wout, Cin*KH*KW).
    TODO(synk): patch extraction is layout-only and kept outside the kernel."""
    b, cin, _, _ = x.shape
    xp = jnp.pad(x, ((0, 0), (0, 0), (padding, padding), (padding, padding)))
    cols = []
    for kh in range(kh_sz):
        for kw in range(kw_sz):
            cols.append(jax.lax.slice(
                xp, (0, 0, kh, kw),
                (b, cin, kh + (hout - 1) * stride + 1, kw + (wout - 1) * stride + 1),
                (1, 1, stride, stride)))
    pat = jnp.stack(cols, axis=2)            # (B, Cin, KH*KW, Hout, Wout)
    pat = pat.transpose(0, 3, 4, 1, 2)       # (B, Hout, Wout, Cin, KH*KW)
    return pat.reshape(b * hout * wout, cin * kh_sz * kw_sz)


@partial(jax.jit, static_argnames=("stride", "padding"))
def conv_with_norms_forward(x, weight, bias, gamma, beta, *, stride, padding):
    """ConvWithNorms.forward: Conv2d -> BatchNorm2d (skipped for 1x1 output) -> GELU."""
    bsz, cin, h, w_in = x.shape
    cout, _, kh, kw = weight.shape
    hout = (h + 2 * padding - kh) // stride + 1
    wout = (w_in + 2 * padding - kw) // stride + 1

    patches = _im2col(x, kh, kw, stride, padding, hout, wout)       # (M, K)
    m, k = patches.shape
    wm = weight.reshape(cout, k).T                                  # (K, Cout)
    bm = bias.reshape(1, cout)

    tm = _pick_row_tile(m)
    mp = ((m + tm - 1) // tm) * tm
    if mp != m:
        patches = jnp.pad(patches, ((0, mp - m), (0, 0)))
    nt = mp // tm

    conv_flat, part_stats = pl.pallas_call(
        partial(_conv_stats_kernel, n_valid=m),
        out_shape=(jax.ShapeDtypeStruct((mp, cout), jnp.float32),
                   jax.ShapeDtypeStruct((nt, 2, cout), jnp.float32)),
        grid=(nt,),
        in_specs=[
            pl.BlockSpec((tm, k), lambda i: (i, 0)),        # im2col patches
            pl.BlockSpec((k, cout), lambda i: (0, 0)),      # conv weight (K, Cout)
            pl.BlockSpec((1, cout), lambda i: (0, 0)),      # conv bias
        ],
        out_specs=(
            pl.BlockSpec((tm, cout), lambda i: (i, 0)),     # conv output rows
            pl.BlockSpec((1, 2, cout), lambda i: (i, 0, 0)),  # per-tile partial stats
        ),
        compiler_params=pltpu.CompilerParams(dimension_semantics=("parallel",)),
    )(patches, wm, bm)

    # Tiny plain-JAX finalize: batch statistics -> per-channel scale / shift.
    sums = jnp.sum(part_stats, axis=0)                      # (2, Cout)
    mean = sums[0] / float(m)
    var = jnp.maximum(sums[1] / float(m) - mean * mean, 0.0)  # biased, as torch BN train

    if hout == 1 and wout == 1:
        # ConvWithNorms skips batch-norm entirely for 1x1 spatial outputs.
        scale = jnp.ones((cout,), jnp.float32)
        shift = jnp.zeros((cout,), jnp.float32)
    else:
        inv_std = jax.lax.rsqrt(var + BN_EPS)
        scale = gamma * inv_std
        shift = beta - mean * scale

    out_flat = pl.pallas_call(
        _bn_gelu_kernel,
        out_shape=jax.ShapeDtypeStruct((mp, cout), jnp.float32),
        grid=(nt,),
        in_specs=[
            pl.BlockSpec((tm, cout), lambda i: (i, 0)),
            pl.BlockSpec((1, cout), lambda i: (0, 0)),
            pl.BlockSpec((1, cout), lambda i: (0, 0)),
        ],
        out_specs=pl.BlockSpec((tm, cout), lambda i: (i, 0)),
        compiler_params=pltpu.CompilerParams(dimension_semantics=("parallel",)),
    )(conv_flat, scale.reshape(1, cout), shift.reshape(1, cout))

    return out_flat[:m].reshape(bsz, hout, wout, cout).transpose(0, 3, 1, 2)


# ------------------------------- reference (plain JAX) --------------------------------

def _reference_forward(x, weight, bias, gamma, beta, *, stride, padding):
    bsz, cin, h, w_in = x.shape
    cout, _, kh, kw = weight.shape
    hout = (h + 2 * padding - kh) // stride + 1
    wout = (w_in + 2 * padding - kw) // stride + 1
    patches = _im2col(x, kh, kw, stride, padding, hout, wout)
    conv = patches @ weight.reshape(cout, -1).T + bias[None, :]
    if not (hout == 1 and wout == 1):
        mean = conv.mean(axis=0)
        var = conv.var(axis=0)                    # biased (ddof=0), matches train-mode BN
        conv = (conv - mean) / jnp.sqrt(var + BN_EPS) * gamma + beta
    y = 0.5 * conv * (1.0 + jax.lax.erf(conv * _INV_SQRT2))
    return y.reshape(bsz, hout, wout, cout).transpose(0, 3, 1, 2)


if __name__ == "__main__":
    key = jax.random.PRNGKey(0)
    k_x, k_w, k_b, k_g, k_be = jax.random.split(key, 5)

    B, CIN, H, W = 2, 4, 16, 16
    COUT, KSZ, STRIDE, PAD = 32, 3, 1, 1

    x = jax.random.normal(k_x, (B, CIN, H, W), jnp.float32)
    fan_in = CIN * KSZ * KSZ
    bound = 1.0 / math.sqrt(fan_in)
    weight = jax.random.uniform(k_w, (COUT, CIN, KSZ, KSZ), jnp.float32, -bound, bound)
    bias = jax.random.uniform(k_b, (COUT,), jnp.float32, -bound, bound)
    gamma = jax.random.uniform(k_g, (COUT,), jnp.float32, 0.5, 1.5)
    beta = 0.1 * jax.random.normal(k_be, (COUT,), jnp.float32)

    out = conv_with_norms_forward(x, weight, bias, gamma, beta, stride=STRIDE, padding=PAD)
    out = jax.block_until_ready(out)

    assert out.shape == (B, COUT, H, W) and out.dtype == jnp.float32
    assert bool(jnp.all(jnp.isfinite(out)))
    ref = _reference_forward(x, weight, bias, gamma, beta, stride=STRIDE, padding=PAD)
    max_err = float(jnp.max(jnp.abs(out - ref)))
    assert bool(jnp.allclose(out, ref, atol=5e-2, rtol=5e-2)), max_err
    print("KERNEL_OK")
</pallas_src>

<mosaic_0001>
module attributes {stable_mosaic.version = 11 : i64} {
  func.func @_conv_stats_kernel(%arg0: i32, %arg1: memref<256x36xf32, #tpu.memory_space<vmem>>, %arg2: memref<36x32xf32, #tpu.memory_space<vmem>>, %arg3: memref<1x32xf32, #tpu.memory_space<vmem>>, %arg4: memref<256x32xf32, #tpu.memory_space<vmem>>, %arg5: memref<1x2x32xf32, #tpu.memory_space<vmem>>) attributes {dimension_semantics = [#tpu.dimension_semantics<parallel>], iteration_bounds = array<i64: 2>, scalar_prefetch = 0 : i64, scratch_operands = 0 : i64, tpu.core_type = #tpu.core_type<tc>, window_params = [{transform_indices = @transform_0, window_bounds = array<i64: 256, 36>}, {pipeline_mode = #tpu.pipeline_mode<synchronous>, transform_indices = @transform_1, window_bounds = array<i64: 36, 32>}, {pipeline_mode = #tpu.pipeline_mode<synchronous>, transform_indices = @transform_2, window_bounds = array<i64: 1, 32>}, {transform_indices = @transform_3, window_bounds = array<i64: 256, 32>}, {transform_indices = @transform_4, window_bounds = array<i64: 1, 2, 32>}]} {
    %c0 = arith.constant 0 : index
    %c0_0 = arith.constant 0 : index
    %0 = vector.load %arg1[%c0, %c0_0] : memref<256x36xf32, #tpu.memory_space<vmem>>, vector<256x36xf32>
    %c0_1 = arith.constant 0 : index
    %c0_2 = arith.constant 0 : index
    %1 = vector.load %arg2[%c0_1, %c0_2] : memref<36x32xf32, #tpu.memory_space<vmem>>, vector<36x32xf32>
    %cst = arith.constant dense<0.000000e+00> : vector<256x32xf32>
    %2 = tpu.matmul %0, %1, %cst {dimension_numbers = #tpu.dot_dimension_numbers<[1], [0], [0], [1], [0, 0, 1, 1], [], []>} : vector<256x36xf32>, vector<36x32xf32>, vector<256x32xf32> -> vector<256x32xf32>
    %c0_3 = arith.constant 0 : index
    %c0_4 = arith.constant 0 : index
    %3 = vector.load %arg3[%c0_3, %c0_4] : memref<1x32xf32, #tpu.memory_space<vmem>>, vector<1x32xf32>
    %4 = vector.broadcast %3 : vector<1x32xf32> to vector<256x32xf32>
    %5 = arith.addf %2, %4 : vector<256x32xf32>
    %c0_5 = arith.constant 0 : index
    %c0_6 = arith.constant 0 : index
    %6 = vector.load %arg4[%c0_5, %c0_6] : memref<256x32xf32, #tpu.memory_space<vmem>>, vector<256x32xf32>
    tpu.vector_store %arg4[%c0_5, %c0_6], %5 {strides = array<i32>} : memref<256x32xf32, #tpu.memory_space<vmem>>, vector<256x32xf32>,
    %7 = tpu.iota {dimensions = array<i32: 0>} : vector<256x32xi32>
    %c256_i32 = arith.constant 256 : i32
    %8 = arith.muli %arg0, %c256_i32 : i32
    %9 = vector.broadcast %8 : i32 to vector<256x32xi32>
    %10 = arith.addi %7, %9 : vector<256x32xi32>
    %c512_i32 = arith.constant 512 : i32
    %11 = vector.broadcast %c512_i32 : i32 to vector<256x32xi32>
    %12 = arith.cmpi slt, %10, %11 : vector<256x32xi32>
    %13 = arith.extui %12 : vector<256x32xi1> to vector<256x32xi32>
    %14 = arith.sitofp %13 : vector<256x32xi32> to vector<256x32xf32>
    %15 = arith.mulf %5, %14 : vector<256x32xf32>
    %cst_7 = arith.constant dense<0.000000e+00> : vector<32xf32>
    %16 = vector.multi_reduction <add>, %15, %cst_7 [0] : vector<256x32xf32> to vector<32xf32>
    %17 = vector.shape_cast %16 : vector<32xf32> to vector<1x32xf32>
    %18 = arith.mulf %15, %5 : vector<256x32xf32>
    %cst_8 = arith.constant dense<0.000000e+00> : vector<32xf32>
    %19 = vector.multi_reduction <add>, %18, %cst_8 [0] : vector<256x32xf32> to vector<32xf32>
    %20 = vector.shape_cast %19 : vector<32xf32> to vector<1x32xf32>
    %21 = tpu.concatenate %17, %20 in 0 : vector<1x32xf32>, vector<1x32xf32> -> vector<2x32xf32>
    %22 = vector.shape_cast %21 : vector<2x32xf32> to vector<1x2x32xf32>
    %c0_9 = arith.constant 0 : index
    %c0_10 = arith.constant 0 : index
    %c0_11 = arith.constant 0 : index
    %23 = vector.load %arg5[%c0_9, %c0_10, %c0_11] : memref<1x2x32xf32, #tpu.memory_space<vmem>>, vector<1x2x32xf32>
    tpu.vector_store %arg5[%c0_9, %c0_10, %c0_11], %22 {strides = array<i32>} : memref<1x2x32xf32, #tpu.memory_space<vmem>>, vector<1x2x32xf32>,
    return
  }
  func.func @transform_0(%arg0: i32) -> (i32, i32) {
    %c0_i32 = arith.constant 0 : i32
    %c0_i32_0 = arith.constant 0 : i32
    return %arg0, %c0_i32 : i32, i32
  }
  func.func @transform_1(%arg0: i32) -> (i32, i32) {
    %c0_i32 = arith.constant 0 : i32
    %c0_i32_0 = arith.constant 0 : i32
    %c0_i32_1 = arith.constant 0 : i32
    return %c0_i32, %c0_i32_0 : i32, i32
  }
  func.func @transform_2(%arg0: i32) -> (i32, i32) {
    %c0_i32 = arith.constant 0 : i32
    %c0_i32_0 = arith.constant 0 : i32
    %c0_i32_1 = arith.constant 0 : i32
    return %c0_i32, %c0_i32_0 : i32, i32
  }
  func.func @transform_3(%arg0: i32) -> (i32, i32) {
    %c0_i32 = arith.constant 0 : i32
    %c0_i32_0 = arith.constant 0 : i32
    return %arg0, %c0_i32 : i32, i32
  }
  func.func @transform_4(%arg0: i32) -> (i32, i32, i32) {
    %c0_i32 = arith.constant 0 : i32
    %c0_i32_0 = arith.constant 0 : i32
    %c0_i32_1 = arith.constant 0 : i32
    return %arg0, %c0_i32, %c0_i32_0 : i32, i32, i32
  }
}

module attributes {stable_mosaic.version = 11 : i64} {
  func.func @_bn_gelu_kernel(%arg0: i32, %arg1: memref<256x32xf32, #tpu.memory_space<vmem>>, %arg2: memref<1x32xf32, #tpu.memory_space<vmem>>, %arg3: memref<1x32xf32, #tpu.memory_space<vmem>>, %arg4: memref<256x32xf32, #tpu.memory_space<vmem>>) attributes {dimension_semantics = [#tpu.dimension_semantics<parallel>], iteration_bounds = array<i64: 2>, scalar_prefetch = 0 : i64, scratch_operands = 0 : i64, tpu.core_type = #tpu.core_type<tc>, window_params = [{transform_indices = @transform_0, window_bounds = array<i64: 256, 32>}, {pipeline_mode = #tpu.pipeline_mode<synchronous>, transform_indices = @transform_1, window_bounds = array<i64: 1, 32>}, {pipeline_mode = #tpu.pipeline_mode<synchronous>, transform_indices = @transform_2, window_bounds = array<i64: 1, 32>}, {transform_indices = @transform_3, window_bounds = array<i64: 256, 32>}]} {
    %c0 = arith.constant 0 : index
    %c0_0 = arith.constant 0 : index
    %0 = vector.load %arg1[%c0, %c0_0] : memref<256x32xf32, #tpu.memory_space<vmem>>, vector<256x32xf32>
    %c0_1 = arith.constant 0 : index
    %c0_2 = arith.constant 0 : index
    %1 = vector.load %arg2[%c0_1, %c0_2] : memref<1x32xf32, #tpu.memory_space<vmem>>, vector<1x32xf32>
    %2 = vector.broadcast %1 : vector<1x32xf32> to vector<256x32xf32>
    %3 = arith.mulf %0, %2 : vector<256x32xf32>
    %c0_3 = arith.constant 0 : index
    %c0_4 = arith.constant 0 : index
    %4 = vector.load %arg3[%c0_3, %c0_4] : memref<1x32xf32, #tpu.memory_space<vmem>>, vector<1x32xf32>
    %5 = vector.broadcast %4 : vector<1x32xf32> to vector<256x32xf32>
    %6 = arith.addf %3, %5 : vector<256x32xf32>
    %cst = arith.constant 5.000000e-01 : f32
    %7 = vector.broadcast %cst : f32 to vector<256x32xf32>
    %8 = arith.mulf %7, %6 : vector<256x32xf32>
    %cst_5 = arith.constant 0.707106769 : f32
    %9 = vector.broadcast %cst_5 : f32 to vector<256x32xf32>
    %10 = arith.mulf %6, %9 : vector<256x32xf32>
    %11 = math.erf %10 : vector<256x32xf32>
    %cst_6 = arith.constant 1.000000e+00 : f32
    %12 = vector.broadcast %cst_6 : f32 to vector<256x32xf32>
    %13 = arith.addf %12, %11 : vector<256x32xf32>
    %14 = arith.mulf %8, %13 : vector<256x32xf32>
    %c0_7 = arith.constant 0 : index
    %c0_8 = arith.constant 0 : index
    %15 = vector.load %arg4[%c0_7, %c0_8] : memref<256x32xf32, #tpu.memory_space<vmem>>, vector<256x32xf32>
    tpu.vector_store %arg4[%c0_7, %c0_8], %14 {strides = array<i32>} : memref<256x32xf32, #tpu.memory_space<vmem>>, vector<256x32xf32>,
    return
  }
  func.func @transform_0(%arg0: i32) -> (i32, i32) {
    %c0_i32 = arith.constant 0 : i32
    %c0_i32_0 = arith.constant 0 : i32
    return %arg0, %c0_i32 : i32, i32
  }
  func.func @transform_1(%arg0: i32) -> (i32, i32) {
    %c0_i32 = arith.constant 0 : i32
    %c0_i32_0 = arith.constant 0 : i32
    %c0_i32_1 = arith.constant 0 : i32
    return %c0_i32, %c0_i32_0 : i32, i32
  }
  func.func @transform_2(%arg0: i32) -> (i32, i32) {
    %c0_i32 = arith.constant 0 : i32
    %c0_i32_0 = arith.constant 0 : i32
    %c0_i32_1 = arith.constant 0 : i32
    return %c0_i32, %c0_i32_0 : i32, i32
  }
  func.func @transform_3(%arg0: i32) -> (i32, i32) {
    %c0_i32 = arith.constant 0 : i32
    %c0_i32_0 = arith.constant 0 : i32
    return %arg0, %c0_i32 : i32, i32
  }
}

</mosaic_0001>

<llo_original>
// kernel: conv_with_norms_forward.3
$region0: #{conv_with_norms_forward.3}
  #allocation0 [shape = 'u32[]', space=smem, size = 0x4, offset = 0x4, fixed_abs, tag = 'smem constant byte address 0x4 - core index']
  #allocation1 [shape = 'u32[144,128]{1,0:T(1,128)}', space=vmem, size = 0x12000, scoped, tag = 'internal scratch']
  %s0 = inlined_call_operand.vmem [shape: f32[512,32], index: 0, kind: input, shape index: {}]
  %s1 = inlined_call_operand.vmem [shape: f32[1,32], index: 1, kind: input, shape index: {}]
  %s2 = inlined_call_operand.vmem [shape: f32[1,32], index: 2, kind: input, shape index: {}]
  %s3 = inlined_call_operand.hbm [shape: f32[512,32], index: 3, kind: output, shape index: {}]
  %s4 = sld [smem:[#allocation0]]
  $region45: #{conv_with_norms_forward.3} parent=0
    _
  %s6 = ssub.s32 1, %s4
  %s7 = scalar_select 0, %s6, %s4
  $region1: #{conv_with_norms_forward.3} parent=0
    #allocation2 [shape = 'u8[262144]{0}', space=vmem, size = 0x40000, scoped, tag = 'output window, operand 0']
    #allocation3 [shape = 's32[2]{0}', space=sflag, size = 0x8, scoped, tag = 'scoped memory for conv_with_norms_forward.3']
    %8 = vsyncpa [#allocation3], 0
    %s9 = scalar_lea.sflag [#allocation3], 1
    %10 = vsyncpa %s9, 0
    loop: start=0, step=1, limit=4
    $region2: #{conv_with_norms_forward.3} parent=1 // loop_pre_header
      _
    $region3: #{conv_with_norms_forward.3} parent=1 // loop_header
      %s12 = sphi 0, %s16
      %p13 = scmp.ge.s32.totalorder %s12, 4
      %s22 = sphi 0, %s24
      %s25 = sphi 0, %s22
      %s26 = sphi 0, %s25
      %s42 = sphi 0, %s26
      %s46 = sphi 0, %s46
      %s48 = sphi 0, %s46
      %s49 = sphi 0, %s48
      %s63 = sphi 0, %s49
      %s67 = sphi 0, %s67
      %s69 = sphi 0, %s67
      %s70 = sphi 0, %s69
      %s84 = sphi 0, %s70
      %s90 = sphi 0, %s92
      %s93 = sphi 0, %s90
      %s94 = sphi 0, %s93
      %s110 = sphi 0, %s94
    $region4: #{conv_with_norms_forward.3} parent=1 // loop_header_branch
      %15 = sbr.rel (%p13) target = $region8
    $region5: #{conv_with_norms_forward.3} parent=1 // loop_body
      %s17 = ssub.s32 %s12, 1
      %s18 = ssub.s32 %s12, 2
      %s19 = sadd.s32 %s12, 1
      %s20 = ssub.s32 %s12, %s19
      %p21 = scmp.eq.s32.totalorder %s20, 0
      %s23 = sadd.s32 %s22, 1
      %s24 = scalar_select %p21, %s22, %s23
      %p27 = pneg %p21
      %p28 = scmp.eq.s32.totalorder %s12, 1
      %p29 = por %p27, %p28
      %p30 = scmp.ne.s32.totalorder %s22, %s25
      %p31 = scmp.eq.s32.totalorder %s12, 0
      %p32 = por %p30, %p31
      %p33 = scmp.ne.s32.totalorder %s22, %s25
      %p34 = scmp.eq.s32.totalorder %s17, 1
      %p35 = por %p33, %p34
      %p36 = scmp.ne.s32.totalorder %s25, %s26
      %p37 = scmp.eq.s32.totalorder %s17, 0
      %p38 = por %p36, %p37
      %p39 = scmp.ne.s32.totalorder %s25, %s26
      %p40 = scmp.eq.s32.totalorder %s18, 1
      %p41 = por %p39, %p40
      %p43 = scmp.ne.s32.totalorder %s26, %s42
      %p44 = scmp.eq.s32.totalorder %s18, 0
      %p45 = por %p43, %p44
      %s47 = sadd.s32 %s46, 1
      %p50 = scmp.eq.s32.totalorder %s12, 1
      %p51 = scmp.ne.s32.totalorder %s46, %s48
      %p52 = scmp.eq.s32.totalorder %s12, 0
      %p53 = por %p51, %p52
      %p54 = scmp.ne.s32.totalorder %s46, %s48
      %p55 = scmp.eq.s32.totalorder %s17, 1
      %p56 = por %p54, %p55
      %p57 = scmp.ne.s32.totalorder %s48, %s49
      %p58 = scmp.eq.s32.totalorder %s17, 0
      %p59 = por %p57, %p58
      %p60 = scmp.ne.s32.totalorder %s48, %s49
      %p61 = scmp.eq.s32.totalorder %s18, 1
      %p62 = por %p60, %p61
      %p64 = scmp.ne.s32.totalorder %s49, %s63
      %p65 = scmp.eq.s32.totalorder %s18, 0
      %p66 = por %p64, %p65
      %s68 = sadd.s32 %s67, 1
      %p71 = scmp.eq.s32.totalorder %s12, 1
      %p72 = scmp.ne.s32.totalorder %s67, %s69
      %p73 = scmp.eq.s32.totalorder %s12, 0
      %p74 = por %p72, %p73
      %p75 = scmp.ne.s32.totalorder %s67, %s69
      %p76 = scmp.eq.s32.totalorder %s17, 1
      %p77 = por %p75, %p76
      %p78 = scmp.ne.s32.totalorder %s69, %s70
      %p79 = scmp.eq.s32.totalorder %s17, 0
      %p80 = por %p78, %p79
      %p81 = scmp.ne.s32.totalorder %s69, %s70
      %p82 = scmp.eq.s32.totalorder %s18, 1
      %p83 = por %p81, %p82
      %p85 = scmp.ne.s32.totalorder %s70, %s84
      %p86 = scmp.eq.s32.totalorder %s18, 0
      %p87 = por %p85, %p86
      %s88 = ssub.s32 %s12, %s19
      %p89 = scmp.eq.s32.totalorder %s88, 0
      %s91 = sadd.s32 %s90, 1
      %s92 = scalar_select %p89, %s90, %s91
      %p95 = pneg %p89
      %p96 = scmp.eq.s32.totalorder %s12, 1
      %p97 = por %p95, %p96
      %p98 = scmp.ne.s32.totalorder %s90, %s93
      %p99 = scmp.eq.s32.totalorder %s12, 0
      %p100 = por %p98, %p99
      %p101 = scmp.ne.s32.totalorder %s90, %s93
      %p102 = scmp.eq.s32.totalorder %s17, 1
      %p103 = por %p101, %p102
      %p104 = scmp.ne.s32.totalorder %s93, %s94
      %p105 = scmp.eq.s32.totalorder %s17, 0
      %p106 = por %p104, %p105
      %p107 = scmp.ne.s32.totalorder %s93, %s94
      %p108 = scmp.eq.s32.totalorder %s18, 1
      %p109 = por %p107, %p108
      %p111 = scmp.ne.s32.totalorder %s94, %s110
      %p112 = scmp.eq.s32.totalorder %s18, 0
      %p113 = por %p111, %p112
      %p114 = scmp.le.s32.totalorder 1, %s12
      %p115 = scmp.lt.s32.totalorder %s12, 3
      %p116 = pnand %p114, %p115
      %p117 = pneg %p116
      // Predicated region
      $region9: #{conv_with_norms_forward.3} parent=5 // pred_check
        _
      $region10: #{conv_with_norms_forward.3} parent=5 // pred_check_branch
        %119 = sbr.rel (%p116) target = $region12
      $region11: #{conv_with_norms_forward.3} parent=5 // pred_region
        %s120 = ssub.s32 %s12, 1
        // Predicated region
        $region13: #{conv_with_norms_forward.3} parent=11 // pred_check
          %p121 = pneg %p59
        $region14: #{conv_with_norms_forward.3} parent=11 // pred_check_branch
          %123 = sbr.rel (%p121) target = $region16
        $region15: #{conv_with_norms_forward.3} parent=11 // pred_region
          _
        $region16: #{conv_with_norms_forward.3} parent=11 // pred_fallthru
          _
        // Predicated region
        $region17: #{conv_with_norms_forward.3} parent=11 // pred_check
          %p124 = pneg %p80
        $region18: #{conv_with_norms_forward.3} parent=11 // pred_check_branch
          %126 = sbr.rel (%p124) target = $region20
        $region19: #{conv_with_norms_forward.3} parent=11 // pred_region
          _
        $region20: #{conv_with_norms_forward.3} parent=11 // pred_fallthru
          _
      $region12: #{conv_with_norms_forward.3} parent=5 // pred_fallthru
        _
      %p127 = scmp.lt.s32.totalorder %s12, 2
      // Predicated region
      $region21: #{conv_with_norms_forward.3} parent=5 // pred_check
        %p128 = pneg %p127
      $region22: #{conv_with_norms_forward.3} parent=5 // pred_check_branch
        %130 = sbr.rel (%p128) target = $region24
      $region23: #{conv_with_norms_forward.3} parent=5 // pred_region
        // Predicated region
        $region25: #{conv_with_norms_forward.3} parent=23 // pred_check
          %p131 = pneg %p32
        $region26: #{conv_with_norms_forward.3} parent=23 // pred_check_branch
          %133 = sbr.rel (%p131) target = $region28
        $region27: #{conv_with_norms_forward.3} parent=23 // pred_region
          %s134 = smul.u32 32, %s12
          %p135 = scmp.lt.s32.totalorder %s134, 63
          %s136 = scalar_select %p135, %s134, 63
          %s137 = smul.addr %s136, 8
          %s138 = scalar_lea.vmem %s0, %s137
          %s139 = smul.u32 32, %s12
        $region28: #{conv_with_norms_forward.3} parent=23 // pred_fallthru
          _
      $region24: #{conv_with_norms_forward.3} parent=5 // pred_fallthru
        _
      %p140 = scmp.le.s32.totalorder 1, %s12
      %p141 = scmp.lt.s32.totalorder %s12, 3
      %p142 = pnand %p140, %p141
      %p143 = pneg %p142
      // Predicated region
      $region29: #{conv_with_norms_forward.3} parent=5 // pred_check
        _
      $region30: #{conv_with_norms_forward.3} parent=5 // pred_check_branch
        %145 = sbr.rel (%p142) target = $region32
      $region31: #{conv_with_norms_forward.3} parent=5 // pred_region
        %s146 = ssub.s32 %s12, 1
        %s147 = smul.u32 32, %s17
        %p148 = scmp.lt.s32.totalorder %s147, 63
        %s149 = scalar_select %p148, %s147, 63
        %s150 = smul.addr %s149, 8
        %s151 = scalar_lea.vmem %s0, %s150
        %p152 = pneg %p38
        %p153 = pneg %p35
        %p154 = pneg %p59
        %p155 = pneg %p56
        %p156 = pneg %p80
        %p157 = pneg %p77
        %p158 = pneg %p106
        %p159 = pneg %p103
        %s160 = sand.u32 %s93, 1
        %s161 = scalar_lea.sflag [#allocation3], %s160
        %s162 = sand.u32 %s93, 1
        %s163 = smul.addr %s162, 256
        %s164 = scalar_lea.vmem [#allocation2], %s163
        %s165 = smul.u32 32, %s17
        %p166 = scmp.lt.s32.totalorder %s165, 63
        %s167 = scalar_select %p166, %s165, 63
        %s168 = smul.addr %s167, 8
        %s169 = scalar_lea.vmem %s0, %s168
        %s170 = smul.u32 32, %s17
        %s171 = smul.u32 32, %s17
        %v172 = vld [vmem:[%s169] sm:$0xff]
        %v173 = vld [vmem:[%s169 + $0x8] sm:$0xff]
        %v174 = vld [vmem:[%s169 + $0x10] sm:$0xff]
        %v175 = vld [vmem:[%s169 + $0x18] sm:$0xff]
        %v176 = vld [vmem:[%s169 + $0x20] sm:$0xff]
        %v177 = vld [vmem:[%s169 + $0x28] sm:$0xff]
        %v178 = vld [vmem:[%s169 + $0x30] sm:$0xff]
        %v179 = vld [vmem:[%s169 + $0x38] sm:$0xff]
        %v180 = vld [vmem:[%s169 + $0x40] sm:$0xff]
        %v181 = vld [vmem:[%s169 + $0x48] sm:$0xff]
        %v182 = vld [vmem:[%s169 + $0x50] sm:$0xff]
        %v183 = vld [vmem:[%s169 + $0x58] sm:$0xff]
        %v184 = vld [vmem:[%s169 + $0x60] sm:$0xff]
        %v185 = vld [vmem:[%s169 + $0x68] sm:$0xff]
        %v186 = vld [vmem:[%s169 + $0x70] sm:$0xff]
        %v187 = vld [vmem:[%s169 + $0x78] sm:$0xff]
        %v188 = vld [vmem:[%s169 + $0x80] sm:$0xff]
        %v189 = vld [vmem:[%s169 + $0x88] sm:$0xff]
        %v190 = vld [vmem:[%s169 + $0x90] sm:$0xff]
        %v191 = vld [vmem:[%s169 + $0x98] sm:$0xff]
        %v192 = vld [vmem:[%s169 + $0xa0] sm:$0xff]
        %v193 = vld [vmem:[%s169 + $0xa8] sm:$0xff]
        %v194 = vld [vmem:[%s169 + $0xb0] sm:$0xff]
        %v195 = vld [vmem:[%s169 + $0xb8] sm:$0xff]
        %v196 = vld [vmem:[%s169 + $0xc0] sm:$0xff]
        %v197 = vld [vmem:[%s169 + $0xc8] sm:$0xff]
        %v198 = vld [vmem:[%s169 + $0xd0] sm:$0xff]
        %v199 = vld [vmem:[%s169 + $0xd8] sm:$0xff]
        %v200 = vld [vmem:[%s169 + $0xe0] sm:$0xff]
        %v201 = vld [vmem:[%s169 + $0xe8] sm:$0xff]
        %v202 = vld [vmem:[%s169 + $0xf0] sm:$0xff]
        %v203 = vld [vmem:[%s169 + $0xf8] sm:$0xff]
        %v204 = vld [vmem:[%s1] sm:$0x1]
        %v206 = vlaneseq
        %v207 = vshrl.u32 %v206, 7
        %v208 = vsub.s32 0, %v207
        %v209 = vrot.slane %v204, %v208
        %v211 = vmul.f32 %v172, %v209
        %v212 = vmul.f32 %v173, %v209
        %v213 = vmul.f32 %v174, %v209
        %v214 = vmul.f32 %v175, %v209
        %v215 = vmul.f32 %v176, %v209
        %v216 = vmul.f32 %v177, %v209
        %v217 = vmul.f32 %v178, %v209
        %v218 = vmul.f32 %v179, %v209
        %v219 = vmul.f32 %v180, %v209
        %v220 = vmul.f32 %v181, %v209
        %v221 = vmul.f32 %v182, %v209
        %v222 = vmul.f32 %v183, %v209
        %v223 = vmul.f32 %v184, %v209
        %v224 = vmul.f32 %v185, %v209
        %v225 = vmul.f32 %v186, %v209
        %v226 = vmul.f32 %v187, %v209
        %v227 = vmul.f32 %v188, %v209
        %v228 = vmul.f32 %v189, %v209
        %v229 = vmul.f32 %v190, %v209
        %v230 = vmul.f32 %v191, %v209
        %v231 = vmul.f32 %v192, %v209
        %v232 = vmul.f32 %v193, %v209
        %v233 = vmul.f32 %v194, %v209
        %v234 = vmul.f32 %v195, %v209
        %v235 = vmul.f32 %v196, %v209
        %v236 = vmul.f32 %v197, %v209
        %v237 = vmul.f32 %v198, %v209
        %v238 = vmul.f32 %v199, %v209
        %v239 = vmul.f32 %v200, %v209
        %v240 = vmul.f32 %v201, %v209
        %v241 = vmul.f32 %v202, %v209
        %v242 = vmul.f32 %v203, %v209
        %v243 = vld [vmem:[%s2] sm:$0x1]
        %v245 = vlaneseq
        %v246 = vshrl.u32 %v245, 7
        %v247 = vsub.s32 0, %v246
        %v248 = vrot.slane %v243, %v247
        %v250 = vadd.f32 %v211, %v248
        %v251 = vadd.f32 %v212, %v248
        %v252 = vadd.f32 %v213, %v248
        %v253 = vadd.f32 %v214, %v248
        %v254 = vadd.f32 %v215, %v248
        %v255 = vadd.f32 %v216, %v248
        %v256 = vadd.f32 %v217, %v248
        %v257 = vadd.f32 %v218, %v248
        %v258 = vadd.f32 %v219, %v248
        %v259 = vadd.f32 %v220, %v248
        %v260 = vadd.f32 %v221, %v248
        %v261 = vadd.f32 %v222, %v248
        %v262 = vadd.f32 %v223, %v248
        %v263 = vadd.f32 %v224, %v248
        %v264 = vadd.f32 %v225, %v248
        %v265 = vadd.f32 %v226, %v248
        %v266 = vadd.f32 %v227, %v248
        %v267 = vadd.f32 %v228, %v248
        %v268 = vadd.f32 %v229, %v248
        %v269 = vadd.f32 %v230, %v248
        %v270 = vadd.f32 %v231, %v248
        %v271 = vadd.f32 %v232, %v248
        %v272 = vadd.f32 %v233, %v248
        %v273 = vadd.f32 %v234, %v248
        %v274 = vadd.f32 %v235, %v248
        %v275 = vadd.f32 %v236, %v248
        %v276 = vadd.f32 %v237, %v248
        %v277 = vadd.f32 %v238, %v248
        %v278 = vadd.f32 %v239, %v248
        %v279 = vadd.f32 %v240, %v248
        %v280 = vadd.f32 %v241, %v248
        %v281 = vadd.f32 %v242, %v248
        %v282 = vmul.f32 %v250, 0.5
        %v283 = vmul.f32 %v251, 0.5
        %v284 = vmul.f32 %v252, 0.5
        %v285 = vmul.f32 %v253, 0.5
        %v286 = vmul.f32 %v254, 0.5
        %v287 = vmul.f32 %v255, 0.5
        %v288 = vmul.f32 %v256, 0.5
        %v289 = vmul.f32 %v257, 0.5
        %v290 = vmul.f32 %v258, 0.5
        %v291 = vmul.f32 %v259, 0.5
        %v292 = vmul.f32 %v260, 0.5
        %v293 = vmul.f32 %v261, 0.5
        %v294 = vmul.f32 %v262, 0.5
        %v295 = vmul.f32 %v263, 0.5
        %v296 = vmul.f32 %v264, 0.5
        %v297 = vmul.f32 %v265, 0.5
        %v298 = vmul.f32 %v266, 0.5
        %v299 = vmul.f32 %v267, 0.5
        %v300 = vmul.f32 %v268, 0.5
        %v301 = vmul.f32 %v269, 0.5
        %v302 = vmul.f32 %v270, 0.5
        %v303 = vmul.f32 %v271, 0.5
        %v304 = vmul.f32 %v272, 0.5
        %v305 = vmul.f32 %v273, 0.5
        %v306 = vmul.f32 %v274, 0.5
        %v307 = vmul.f32 %v275, 0.5
        %v308 = vmul.f32 %v276, 0.5
        %v309 = vmul.f32 %v277, 0.5
        %v310 = vmul.f32 %v278, 0.5
        %v311 = vmul.f32 %v279, 0.5
        %v312 = vmul.f32 %v280, 0.5
        %v313 = vmul.f32 %v281, 0.5
        %v314 = vmul.f32 %v250, 0.70710677
        %v315 = vmul.f32 %v251, 0.70710677
        %v316 = vmul.f32 %v252, 0.70710677
        %v317 = vmul.f32 %v253, 0.70710677
        %v318 = vmul.f32 %v254, 0.70710677
        %v319 = vmul.f32 %v255, 0.70710677
        %v320 = vmul.f32 %v256, 0.70710677
        %v321 = vmul.f32 %v257, 0.70710677
        %v322 = vmul.f32 %v258, 0.70710677
        %v323 = vmul.f32 %v259, 0.70710677
        %v324 = vmul.f32 %v260, 0.70710677
        %v325 = vmul.f32 %v261, 0.70710677
        %v326 = vmul.f32 %v262, 0.70710677
        %v327 = vmul.f32 %v263, 0.70710677
        %v328 = vmul.f32 %v264, 0.70710677
        %v329 = vmul.f32 %v265, 0.70710677
        %v330 = vmul.f32 %v266, 0.70710677
        %v331 = vmul.f32 %v267, 0.70710677
        %v332 = vmul.f32 %v268, 0.70710677
        %v333 = vmul.f32 %v269, 0.70710677
        %v334 = vmul.f32 %v270, 0.70710677
        %v335 = vmul.f32 %v271, 0.70710677
        %v336 = vmul.f32 %v272, 0.70710677
        %v337 = vmul.f32 %v273, 0.70710677
        %v338 = vmul.f32 %v274, 0.70710677
        %v339 = vmul.f32 %v275, 0.70710677
        %v340 = vmul.f32 %v276, 0.70710677
        %v341 = vmul.f32 %v277, 0.70710677
        %v342 = vmul.f32 %v278, 0.70710677
        %v343 = vmul.f32 %v279, 0.70710677
        %v344 = vmul.f32 %v280, 0.70710677
        %v345 = vmul.f32 %v281, 0.70710677
        %v346 = verf.f32.pop %v314
        %v347 = verf.f32.pop %v315
        %v348 = verf.f32.pop %v316
        %v349 = verf.f32.pop %v317
        %v350 = verf.f32.pop %v318
        %v351 = verf.f32.pop %v319
        %v352 = verf.f32.pop %v320
        %v353 = verf.f32.pop %v321
        %v354 = verf.f32.pop %v322
        %v355 = verf.f32.pop %v323
        %v356 = verf.f32.pop %v324
        %v357 = verf.f32.pop %v325
        %v358 = verf.f32.pop %v326
        %v359 = verf.f32.pop %v327
        %v360 = verf.f32.pop %v328
        %v361 = verf.f32.pop %v329
        %v362 = verf.f32.pop %v330
        %v363 = verf.f32.pop %v331
        %v364 = verf.f32.pop %v332
        %v365 = verf.f32.pop %v333
        %v366 = verf.f32.pop %v334
        %v367 = verf.f32.pop %v335
        %v368 = verf.f32.pop %v336
        %v369 = verf.f32.pop %v337
        %v370 = verf.f32.pop %v338
        %v371 = verf.f32.pop %v339
        %v372 = verf.f32.pop %v340
        %v373 = verf.f32.pop %v341
        %v374 = verf.f32.pop %v342
        %v375 = verf.f32.pop %v343
        %v376 = verf.f32.pop %v344
        %v377 = verf.f32.pop %v345
        %v378 = vadd.f32 %v346, 1.0
        %v379 = vadd.f32 %v347, 1.0
        %v380 = vadd.f32 %v348, 1.0
        %v381 = vadd.f32 %v349, 1.0
        %v382 = vadd.f32 %v350, 1.0
        %v383 = vadd.f32 %v351, 1.0
        %v384 = vadd.f32 %v352, 1.0
        %v385 = vadd.f32 %v353, 1.0
        %v386 = vadd.f32 %v354, 1.0
        %v387 = vadd.f32 %v355, 1.0
        %v388 = vadd.f32 %v356, 1.0
        %v389 = vadd.f32 %v357, 1.0
        %v390 = vadd.f32 %v358, 1.0
        %v391 = vadd.f32 %v359, 1.0
        %v392 = vadd.f32 %v360, 1.0
        %v393 = vadd.f32 %v361, 1.0
        %v394 = vadd.f32 %v362, 1.0
        %v395 = vadd.f32 %v363, 1.0
        %v396 = vadd.f32 %v364, 1.0
        %v397 = vadd.f32 %v365, 1.0
        %v398 = vadd.f32 %v366, 1.0
        %v399 = vadd.f32 %v367, 1.0
        %v400 = vadd.f32 %v368, 1.0
        %v401 = vadd.f32 %v369, 1.0
        %v402 = vadd.f32 %v370, 1.0
        %v403 = vadd.f32 %v371, 1.0
        %v404 = vadd.f32 %v372, 1.0
        %v405 = vadd.f32 %v373, 1.0
        %v406 = vadd.f32 %v374, 1.0
        %v407 = vadd.f32 %v375, 1.0
        %v408 = vadd.f32 %v376, 1.0
        %v409 = vadd.f32 %v377, 1.0
        %v410 = vmul.f32 %v282, %v378
        %v411 = vmul.f32 %v283, %v379
        %v412 = vmul.f32 %v284, %v380
        %v413 = vmul.f32 %v285, %v381
        %v414 = vmul.f32 %v286, %v382
        %v415 = vmul.f32 %v287, %v383
        %v416 = vmul.f32 %v288, %v384
        %v417 = vmul.f32 %v289, %v385
        %v418 = vmul.f32 %v290, %v386
        %v419 = vmul.f32 %v291, %v387
        %v420 = vmul.f32 %v292, %v388
        %v421 = vmul.f32 %v293, %v389
        %v422 = vmul.f32 %v294, %v390
        %v423 = vmul.f32 %v295, %v391
        %v424 = vmul.f32 %v296, %v392
        %v425 = vmul.f32 %v297, %v393
        %v426 = vmul.f32 %v298, %v394
        %v427 = vmul.f32 %v299, %v395
        %v428 = vmul.f32 %v300, %v396
        %v429 = vmul.f32 %v301, %v397
        %v430 = vmul.f32 %v302, %v398
        %v431 = vmul.f32 %v303, %v399
        %v432 = vmul.f32 %v304, %v400
        %v433 = vmul.f32 %v305, %v401
        %v434 = vmul.f32 %v306, %v402
        %v435 = vmul.f32 %v307, %v403
        %v436 = vmul.f32 %v308, %v404
        %v437 = vmul.f32 %v309, %v405
        %v438 = vmul.f32 %v310, %v406
        %v439 = vmul.f32 %v311, %v407
        %v440 = vmul.f32 %v312, %v408
        %v441 = vmul.f32 %v313, %v409
        %vm442 = vcmask 261120
        %443 = vst.msk [vmem:[%s164] sm:$0xff] %vm442, %v410
        %444 = vst.msk [vmem:[%s164 + $0x8] sm:$0xff] %vm442, %v411
        %445 = vst.msk [vmem:[%s164 + $0x10] sm:$0xff] %vm442, %v412
        %446 = vst.msk [vmem:[%s164 + $0x18] sm:$0xff] %vm442, %v413
        %447 = vst.msk [vmem:[%s164 + $0x20] sm:$0xff] %vm442, %v414
        %448 = vst.msk [vmem:[%s164 + $0x28] sm:$0xff] %vm442, %v415
        %449 = vst.msk [vmem:[%s164 + $0x30] sm:$0xff] %vm442, %v416
        %450 = vst.msk [vmem:[%s164 + $0x38] sm:$0xff] %vm442, %v417
        %451 = vst.msk [vmem:[%s164 + $0x40] sm:$0xff] %vm442, %v418
        %452 = vst.msk [vmem:[%s164 + $0x48] sm:$0xff] %vm442, %v419
        %453 = vst.msk [vmem:[%s164 + $0x50] sm:$0xff] %vm442, %v420
        %454 = vst.msk [vmem:[%s164 + $0x58] sm:$0xff] %vm442, %v421
        %455 = vst.msk [vmem:[%s164 + $0x60] sm:$0xff] %vm442, %v422
        %456 = vst.msk [vmem:[%s164 + $0x68] sm:$0xff] %vm442, %v423
        %457 = vst.msk [vmem:[%s164 + $0x70] sm:$0xff] %vm442, %v424
        %458 = vst.msk [vmem:[%s164 + $0x78] sm:$0xff] %vm442, %v425
        %459 = vst.msk [vmem:[%s164 + $0x80] sm:$0xff] %vm442, %v426
        %460 = vst.msk [vmem:[%s164 + $0x88] sm:$0xff] %vm442, %v427
        %461 = vst.msk [vmem:[%s164 + $0x90] sm:$0xff] %vm442, %v428
        %462 = vst.msk [vmem:[%s164 + $0x98] sm:$0xff] %vm442, %v429
        %463 = vst.msk [vmem:[%s164 + $0xa0] sm:$0xff] %vm442, %v430
        %464 = vst.msk [vmem:[%s164 + $0xa8] sm:$0xff] %vm442, %v431
        %465 = vst.msk [vmem:[%s164 + $0xb0] sm:$0xff] %vm442, %v432
        %466 = vst.msk [vmem:[%s164 + $0xb8] sm:$0xff] %vm442, %v433
        %467 = vst.msk [vmem:[%s164 + $0xc0] sm:$0xff] %vm442, %v434
        %468 = vst.msk [vmem:[%s164 + $0xc8] sm:$0xff] %vm442, %v435
        %469 = vst.msk [vmem:[%s164 + $0xd0] sm:$0xff] %vm442, %v436
        %470 = vst.msk [vmem:[%s164 + $0xd8] sm:$0xff] %vm442, %v437
        %471 = vst.msk [vmem:[%s164 + $0xe0] sm:$0xff] %vm442, %v438
        %472 = vst.msk [vmem:[%s164 + $0xe8] sm:$0xff] %vm442, %v439
        %473 = vst.msk [vmem:[%s164 + $0xf0] sm:$0xff] %vm442, %v440
        %474 = vst.msk [vmem:[%s164 + $0xf8] sm:$0xff] %vm442, %v441
        %s475 = sand.u32 %s93, 1
        %s476 = scalar_lea.sflag [#allocation3], %s475
        %s477 = sand.u32 %s93, 1
        %s478 = smul.addr %s477, 256
        %s479 = scalar_lea.vmem [#allocation2], %s478
        // Predicated region
        $region33: #{conv_with_norms_forward.3} parent=31 // pred_check
          %p480 = pneg %p103
        $region34: #{conv_with_norms_forward.3} parent=31 // pred_check_branch
          %482 = sbr.rel (%p480) target = $region36
        $region35: #{conv_with_norms_forward.3} parent=31 // pred_region
          %s483 = smul.u32 32, %s17
          %s485 = ssub.s32 4096, 4096
          %486 = vsyncadd %s476, %s485
          %s487 = smul.addr %s483, 128
          %s488 = scalar_lea.hbm %s3, %s487
          %s489 = sshll.u32 %s479, 4
          %s490 = int_to_ptr.vmem [resolvable:$true] %s489
          %495 = dma.vmem_to_hbm [thread:$0]  %s490, 4096, %s488, %s476, 128, 128, 8
        $region36: #{conv_with_norms_forward.3} parent=31 // pred_fallthru
          _
      $region32: #{conv_with_norms_forward.3} parent=5 // pred_fallthru
        _
      %p496 = scmp.le.s32.totalorder 2, %s12
      // Predicated region
      $region37: #{conv_with_norms_forward.3} parent=5 // pred_check
        %p497 = pneg %p496
      $region38: #{conv_with_norms_forward.3} parent=5 // pred_check_branch
        %499 = sbr.rel (%p497) target = $region40
      $region39: #{conv_with_norms_forward.3} parent=5 // pred_region
        %s500 = ssub.s32 %s12, 2
        // Predicated region
        $region41: #{conv_with_norms_forward.3} parent=39 // pred_check
          %p501 = pneg %p109
        $region42: #{conv_with_norms_forward.3} parent=39 // pred_check_branch
          %503 = sbr.rel (%p501) target = $region44
        $region43: #{conv_with_norms_forward.3} parent=39 // pred_region
          %s504 = sand.u32 %s94, 1
          %s505 = scalar_lea.sflag [#allocation3], %s504
          %s506 = sand.u32 %s94, 1
          %s507 = smul.addr %s506, 256
          %s508 = scalar_lea.vmem [#allocation2], %s507
          %509 = dma.done %s505, 4096
        $region44: #{conv_with_norms_forward.3} parent=39 // pred_fallthru
          _
      $region40: #{conv_with_norms_forward.3} parent=5 // pred_fallthru
        _
    $region6: #{conv_with_norms_forward.3} parent=1 // loop_footer
      %s16 = sadd.s32 1, %s12
    $region7: #{conv_with_norms_forward.3} parent=1 // loop_footer_branch
      %11 = sbr.rel target = $region3
    $region8: #{conv_with_norms_forward.3} parent=1 // loop_exit
      _
    %510 = vsyncpa [#allocation3], 1
    %s511 = scalar_lea.sflag [#allocation3], 1
    %512 = vsyncpa %s511, 1

// kernel: conv_with_norms_forward.2
$region0: #{conv_with_norms_forward.2}
  #allocation0 [shape = 'u32[]', space=smem, size = 0x4, offset = 0x4, fixed_abs, tag = 'smem constant byte address 0x4 - core index']
  #allocation1 [shape = 'u32[144,128]{1,0:T(1,128)}', space=vmem, size = 0x12000, scoped, tag = 'internal scratch']
  %s0 = inlined_call_operand.vmem [shape: f32[512,36], index: 0, kind: input, shape index: {}]
  %s1 = inlined_call_operand.vmem [shape: f32[36,32], index: 1, kind: input, shape index: {}]
  %s2 = inlined_call_operand.vmem [shape: f32[1,32], index: 2, kind: input, shape index: {}]
  %s3 = inlined_call_operand.vmem [shape: f32[512,32], index: 3, kind: output, shape index: {0}]
  %s4 = inlined_call_operand.vmem [shape: f32[2,2,32], index: 4, kind: output, shape index: {1}]
  %5 = xla_tuple %s3, %s4
  %s6 = sld [smem:[#allocation0]]
  $region53: #{conv_with_norms_forward.2} parent=0
    _
  %s8 = ssub.s32 1, %s6
  %s9 = scalar_select 0, %s8, %s6
  loop: start=0, step=1, limit=4
  $region2: #{conv_with_norms_forward.2} parent=0 // loop_pre_header
    _
  $region3: #{conv_with_norms_forward.2} parent=0 // loop_header
    %s11 = sphi 0, %s15
    %p12 = scmp.ge.s32.totalorder %s11, 4
    %s21 = sphi 0, %s23
    %s24 = sphi 0, %s21
    %s25 = sphi 0, %s24
    %s41 = sphi 0, %s25
    %s45 = sphi 0, %s45
    %s47 = sphi 0, %s45
    %s48 = sphi 0, %s47
    %s62 = sphi 0, %s48
    %s66 = sphi 0, %s66
    %s68 = sphi 0, %s66
    %s69 = sphi 0, %s68
    %s83 = sphi 0, %s69
    %s89 = sphi 0, %s91
    %s92 = sphi 0, %s89
    %s93 = sphi 0, %s92
    %s109 = sphi 0, %s93
    %s115 = sphi 0, %s117
    %s118 = sphi 0, %s115
    %s119 = sphi 0, %s118
    %s135 = sphi 0, %s119
  $region4: #{conv_with_norms_forward.2} parent=0 // loop_header_branch
    %14 = sbr.rel (%p12) target = $region8
  $region5: #{conv_with_norms_forward.2} parent=0 // loop_body
    %s16 = ssub.s32 %s11, 1
    %s17 = ssub.s32 %s11, 2
    %s18 = sadd.s32 %s11, 1
    %s19 = ssub.s32 %s11, %s18
    %p20 = scmp.eq.s32.totalorder %s19, 0
    %s22 = sadd.s32 %s21, 1
    %s23 = scalar_select %p20, %s21, %s22
    %p26 = pneg %p20
    %p27 = scmp.eq.s32.totalorder %s11, 1
    %p28 = por %p26, %p27
    %p29 = scmp.ne.s32.totalorder %s21, %s24
    %p30 = scmp.eq.s32.totalorder %s11, 0
    %p31 = por %p29, %p30
    %p32 = scmp.ne.s32.totalorder %s21, %s24
    %p33 = scmp.eq.s32.totalorder %s16, 1
    %p34 = por %p32, %p33
    %p35 = scmp.ne.s32.totalorder %s24, %s25
    %p36 = scmp.eq.s32.totalorder %s16, 0
    %p37 = por %p35, %p36
    %p38 = scmp.ne.s32.totalorder %s24, %s25
    %p39 = scmp.eq.s32.totalorder %s17, 1
    %p40 = por %p38, %p39
    %p42 = scmp.ne.s32.totalorder %s25, %s41
    %p43 = scmp.eq.s32.totalorder %s17, 0
    %p44 = por %p42, %p43
    %s46 = sadd.s32 %s45, 1
    %p49 = scmp.eq.s32.totalorder %s11, 1
    %p50 = scmp.ne.s32.totalorder %s45, %s47
    %p51 = scmp.eq.s32.totalorder %s11, 0
    %p52 = por %p50, %p51
    %p53 = scmp.ne.s32.totalorder %s45, %s47
    %p54 = scmp.eq.s32.totalorder %s16, 1
    %p55 = por %p53, %p54
    %p56 = scmp.ne.s32.totalorder %s47, %s48
    %p57 = scmp.eq.s32.totalorder %s16, 0
    %p58 = por %p56, %p57
    %p59 = scmp.ne.s32.totalorder %s47, %s48
    %p60 = scmp.eq.s32.totalorder %s17, 1
    %p61 = por %p59, %p60
    %p63 = scmp.ne.s32.totalorder %s48, %s62
    %p64 = scmp.eq.s32.totalorder %s17, 0
    %p65 = por %p63, %p64
    %s67 = sadd.s32 %s66, 1
    %p70 = scmp.eq.s32.totalorder %s11, 1
    %p71 = scmp.ne.s32.totalorder %s66, %s68
    %p72 = scmp.eq.s32.totalorder %s11, 0
    %p73 = por %p71, %p72
    %p74 = scmp.ne.s32.totalorder %s66, %s68
    %p75 = scmp.eq.s32.totalorder %s16, 1
    %p76 = por %p74, %p75
    %p77 = scmp.ne.s32.totalorder %s68, %s69
    %p78 = scmp.eq.s32.totalorder %s16, 0
    %p79 = por %p77, %p78
    %p80 = scmp.ne.s32.totalorder %s68, %s69
    %p81 = scmp.eq.s32.totalorder %s17, 1
    %p82 = por %p80, %p81
    %p84 = scmp.ne.s32.totalorder %s69, %s83
    %p85 = scmp.eq.s32.totalorder %s17, 0
    %p86 = por %p84, %p85
    %s87 = ssub.s32 %s11, %s18
    %p88 = scmp.eq.s32.totalorder %s87, 0
    %s90 = sadd.s32 %s89, 1
    %s91 = scalar_select %p88, %s89, %s90
    %p94 = pneg %p88
    %p95 = scmp.eq.s32.totalorder %s11, 1
    %p96 = por %p94, %p95
    %p97 = scmp.ne.s32.totalorder %s89, %s92
    %p98 = scmp.eq.s32.totalorder %s11, 0
    %p99 = por %p97, %p98
    %p100 = scmp.ne.s32.totalorder %s89, %s92
    %p101 = scmp.eq.s32.totalorder %s16, 1
    %p102 = por %p100, %p101
    %p103 = scmp.ne.s32.totalorder %s92, %s93
    %p104 = scmp.eq.s32.totalorder %s16, 0
    %p105 = por %p103, %p104
    %p106 = scmp.ne.s32.totalorder %s92, %s93
    %p107 = scmp.eq.s32.totalorder %s17, 1
    %p108 = por %p106, %p107
    %p110 = scmp.ne.s32.totalorder %s93, %s109
    %p111 = scmp.eq.s32.totalorder %s17, 0
    %p112 = por %p110, %p111
    %s113 = ssub.s32 %s11, %s18
    %p114 = scmp.eq.s32.totalorder %s113, 0
    %s116 = sadd.s32 %s115, 1
    %s117 = scalar_select %p114, %s115, %s116
    %p120 = pneg %p114
    %p121 = scmp.eq.s32.totalorder %s11, 1
    %p122 = por %p120, %p121
    %p123 = scmp.ne.s32.totalorder %s115, %s118
    %p124 = scmp.eq.s32.totalorder %s11, 0
    %p125 = por %p123, %p124
    %p126 = scmp.ne.s32.totalorder %s115, %s118
    %p127 = scmp.eq.s32.totalorder %s16, 1
    %p128 = por %p126, %p127
    %p129 = scmp.ne.s32.totalorder %s118, %s119
    %p130 = scmp.eq.s32.totalorder %s16, 0
    %p131 = por %p129, %p130
    %p132 = scmp.ne.s32.totalorder %s118, %s119
    %p133 = scmp.eq.s32.totalorder %s17, 1
    %p134 = por %p132, %p133
    %p136 = scmp.ne.s32.totalorder %s119, %s135
    %p137 = scmp.eq.s32.totalorder %s17, 0
    %p138 = por %p136, %p137
    %p139 = scmp.le.s32.totalorder 1, %s11
    %p140 = scmp.lt.s32.totalorder %s11, 3
    %p141 = pnand %p139, %p140
    %p142 = pneg %p141
    // Predicated region
    $region9: #{conv_with_norms_forward.2} parent=5 // pred_check
      _
    $region10: #{conv_with_norms_forward.2} parent=5 // pred_check_branch
      %144 = sbr.rel (%p141) target = $region12
    $region11: #{conv_with_norms_forward.2} parent=5 // pred_region
      %s145 = ssub.s32 %s11, 1
      // Predicated region
      $region13: #{conv_with_norms_forward.2} parent=11 // pred_check
        %p146 = pneg %p58
      $region14: #{conv_with_norms_forward.2} parent=11 // pred_check_branch
        %148 = sbr.rel (%p146) target = $region16
      $region15: #{conv_with_norms_forward.2} parent=11 // pred_region
        _
      $region16: #{conv_with_norms_forward.2} parent=11 // pred_fallthru
        _
      // Predicated region
      $region17: #{conv_with_norms_forward.2} parent=11 // pred_check
        %p149 = pneg %p79
      $region18: #{conv_with_norms_forward.2} parent=11 // pred_check_branch
        %151 = sbr.rel (%p149) target = $region20
      $region19: #{conv_with_norms_forward.2} parent=11 // pred_region
        _
      $region20: #{conv_with_norms_forward.2} parent=11 // pred_fallthru
        _
    $region12: #{conv_with_norms_forward.2} parent=5 // pred_fallthru
      _
    %p152 = scmp.lt.s32.totalorder %s11, 2
    // Predicated region
    $region21: #{conv_with_norms_forward.2} parent=5 // pred_check
      %p153 = pneg %p152
    $region22: #{conv_with_norms_forward.2} parent=5 // pred_check_branch
      %155 = sbr.rel (%p153) target = $region24
    $region23: #{conv_with_norms_forward.2} parent=5 // pred_region
      // Predicated region
      $region25: #{conv_with_norms_forward.2} parent=23 // pred_check
        %p156 = pneg %p31
      $region26: #{conv_with_norms_forward.2} parent=23 // pred_check_branch
        %158 = sbr.rel (%p156) target = $region28
      $region27: #{conv_with_norms_forward.2} parent=23 // pred_region
        %s159 = smul.u32 32, %s11
        %p160 = scmp.lt.s32.totalorder %s159, 63
        %s161 = scalar_select %p160, %s159, 63
        %s162 = smul.addr %s161, 8
        %s163 = scalar_lea.vmem %s0, %s162
        %s164 = smul.u32 32, %s11
      $region28: #{conv_with_norms_forward.2} parent=23 // pred_fallthru
        _
    $region24: #{conv_with_norms_forward.2} parent=5 // pred_fallthru
      _
    %p165 = scmp.le.s32.totalorder 1, %s11
    %p166 = scmp.lt.s32.totalorder %s11, 3
    %p167 = pnand %p165, %p166
    %p168 = pneg %p167
    // Predicated region
    $region29: #{conv_with_norms_forward.2} parent=5 // pred_check
      _
    $region30: #{conv_with_norms_forward.2} parent=5 // pred_check_branch
      %170 = sbr.rel (%p167) target = $region32
    $region31: #{conv_with_norms_forward.2} parent=5 // pred_region
      %s171 = ssub.s32 %s11, 1
      %s172 = smul.u32 32, %s16
      %p173 = scmp.lt.s32.totalorder %s172, 63
      %s174 = scalar_select %p173, %s172, 63
      %s175 = smul.addr %s174, 8
      %s176 = scalar_lea.vmem %s0, %s175
      %p177 = pneg %p37
      %p178 = pneg %p34
      %p179 = pneg %p58
      %p180 = pneg %p55
      %p181 = pneg %p79
      %p182 = pneg %p76
      %p183 = pneg %p105
      %p184 = pneg %p102
      %s185 = smul.u32 32, %s16
      %p186 = scmp.lt.s32.totalorder %s185, 63
      %s187 = scalar_select %p186, %s185, 63
      %s188 = smul.addr %s187, 8
      %s189 = scalar_lea.vmem %s3, %s188
      %p190 = pneg %p131
      %p191 = pneg %p128
      %p192 = scmp.lt.s32.totalorder %s16, 1
      %s193 = scalar_select %p192, %s16, 1
      %s194 = smul.addr %s193, 2
      %s195 = scalar_lea.vmem %s4, %s194
      %s196 = smul.u32 32, %s16
      %p197 = scmp.lt.s32.totalorder %s196, 63
      %s198 = scalar_select %p197, %s196, 63
      %s199 = smul.addr %s198, 8
      %s200 = scalar_lea.vmem %s0, %s199
      %s201 = smul.u32 32, %s16
      %s202 = smul.u32 32, %s16
      %p203 = scmp.lt.s32.totalorder %s202, 63
      %s204 = scalar_select %p203, %s202, 63
      %s205 = smul.addr %s204, 8
      %s206 = scalar_lea.vmem %s3, %s205
      %s207 = smul.u32 32, %s16
      %p208 = scmp.lt.s32.totalorder %s16, 1
      %s209 = scalar_select %p208, %s16, 1
      %s210 = smul.addr %s209, 2
      %s211 = scalar_lea.vmem %s4, %s210
      %v212 = vld [vmem:[%s200] sm:$0xff]
      %v213 = vld [vmem:[%s200 + $0x8] sm:$0xff]
      %v214 = vld [vmem:[%s200 + $0x10] sm:$0xff]
      %v215 = vld [vmem:[%s200 + $0x18] sm:$0xff]
      %v216 = vld [vmem:[%s200 + $0x20] sm:$0xff]
      %v217 = vld [vmem:[%s200 + $0x28] sm:$0xff]
      %v218 = vld [vmem:[%s200 + $0x30] sm:$0xff]
      %v219 = vld [vmem:[%s200 + $0x38] sm:$0xff]
      %v220 = vld [vmem:[%s200 + $0x40] sm:$0xff]
      %v221 = vld [vmem:[%s200 + $0x48] sm:$0xff]
      %v222 = vld [vmem:[%s200 + $0x50] sm:$0xff]
      %v223 = vld [vmem:[%s200 + $0x58] sm:$0xff]
      %v224 = vld [vmem:[%s200 + $0x60] sm:$0xff]
      %v225 = vld [vmem:[%s200 + $0x68] sm:$0xff]
      %v226 = vld [vmem:[%s200 + $0x70] sm:$0xff]
      %v227 = vld [vmem:[%s200 + $0x78] sm:$0xff]
      %v228 = vld [vmem:[%s200 + $0x80] sm:$0xff]
      %v229 = vld [vmem:[%s200 + $0x88] sm:$0xff]
      %v230 = vld [vmem:[%s200 + $0x90] sm:$0xff]
      %v231 = vld [vmem:[%s200 + $0x98] sm:$0xff]
      %v232 = vld [vmem:[%s200 + $0xa0] sm:$0xff]
      %v233 = vld [vmem:[%s200 + $0xa8] sm:$0xff]
      %v234 = vld [vmem:[%s200 + $0xb0] sm:$0xff]
      %v235 = vld [vmem:[%s200 + $0xb8] sm:$0xff]
      %v236 = vld [vmem:[%s200 + $0xc0] sm:$0xff]
      %v237 = vld [vmem:[%s200 + $0xc8] sm:$0xff]
      %v238 = vld [vmem:[%s200 + $0xd0] sm:$0xff]
      %v239 = vld [vmem:[%s200 + $0xd8] sm:$0xff]
      %v240 = vld [vmem:[%s200 + $0xe0] sm:$0xff]
      %v241 = vld [vmem:[%s200 + $0xe8] sm:$0xff]
      %v242 = vld [vmem:[%s200 + $0xf0] sm:$0xff]
      %v243 = vld [vmem:[%s200 + $0xf8] sm:$0xff]
      %v244 = vld [vmem:[%s1] sm:$0xff]
      %v245 = vld [vmem:[%s1 + $0x8] sm:$0xff]
      %v246 = vld [vmem:[%s1 + $0x10] sm:$0xff]
      %v247 = vld [vmem:[%s1 + $0x18] sm:$0xff]
      %v248 = vld [vmem:[%s1 + $0x20] sm:$0xf]
      %v249 = vld [vmem:[%s2] sm:$0x1]
      %v251 = vlaneseq
      %v252 = vshrl.u32 %v251, 7
      %v253 = vsub.s32 0, %v252
      %v254 = vrot.slane %v249, %v253
      %vm256 = vcmask 293888
      %v258 = vsel %vm256, %v212, 0
      %v261 = vsel %vm256, %v213, 0
      %v264 = vsel %vm256, %v214, 0
      %v267 = vsel %vm256, %v215, 0
      %v270 = vsel %vm256, %v216, 0
      %v273 = vsel %vm256, %v217, 0
      %v276 = vsel %vm256, %v218, 0
      %v279 = vsel %vm256, %v219, 0
      %v282 = vsel %vm256, %v220, 0
      %v285 = vsel %vm256, %v221, 0
      %v288 = vsel %vm256, %v222, 0
      %v291 = vsel %vm256, %v223, 0
      %v294 = vsel %vm256, %v224, 0
      %v297 = vsel %vm256, %v225, 0
      %v300 = vsel %vm256, %v226, 0
      %v303 = vsel %vm256, %v227, 0
      %v306 = vsel %vm256, %v228, 0
      %v309 = vsel %vm256, %v229, 0
      %v312 = vsel %vm256, %v230, 0
      %v315 = vsel %vm256, %v231, 0
      %v318 = vsel %vm256, %v232, 0
      %v321 = vsel %vm256, %v233, 0
      %v324 = vsel %vm256, %v234, 0
      %v327 = vsel %vm256, %v235, 0
      %v330 = vsel %vm256, %v236, 0
      %v333 = vsel %vm256, %v237, 0
      %v336 = vsel %vm256, %v238, 0
      %v339 = vsel %vm256, %v239, 0
      %v342 = vsel %vm256, %v240, 0
      %v345 = vsel %vm256, %v241, 0
      %v348 = vsel %vm256, %v242, 0
      %v351 = vsel %vm256, %v243, 0
      %vm353 = vcmask 1043456
      %v355 = vsel %vm353, %v248, 0
      %357 = vmatprep.subr.mxu0 0.0
      %358 = vmatpush1.msra.mxu0 0.0
      %359 = vmatprep.subr.mxu0 0.0
      %360 = vmatpush1.msra.mxu0 0.0
      %361 = vmatprep.subr.mxu0 0.0
      %362 = vmatpush1.msra.mxu0 0.0
      %363 = vmatprep.subr.mxu0 0.0
      %364 = vmatpush1.msra.mxu0 0.0
      %365 = vmatprep.subr.mxu0 0.0
      %366 = vmatpush1.msra.mxu0 0.0
      %367 = vmatprep.subr.mxu0 0.0
      %368 = vmatpush1.msra.mxu0 0.0
      %369 = vmatprep.subr.mxu0 0.0
      %370 = vmatpush1.msra.mxu0 0.0
      %371 = vmatprep.subr.mxu0 0.0
      %372 = vmatpush1.msra.mxu0 0.0
      %373 = vmatprep.subr.mxu0 0.0
      %374 = vmatpush1.msra.mxu0 0.0
      %375 = vmatprep.subr.mxu0 0.0
      %376 = vmatpush1.msra.mxu0 0.0
      %377 = vmatprep.subr.mxu0 0.0
      %378 = vmatpush1.msra.mxu0 0.0
      %379 = vmatprep.subr.mxu0 0.0
      %380 = vmatpush1.msra.mxu0 %v355
      %381 = vmatprep.subr.mxu0 0.0
      %382 = vmatpush1.msra.mxu0 %v247
      %383 = vmatprep.subr.mxu0 0.0
      %384 = vmatpush1.msra.mxu0 %v246
      %385 = vmatprep.subr.mxu0 0.0
      %386 = vmatpush1.msra.mxu0 %v245
      %387 = vmatprep.subr.mxu0 0.0
      %388 = vmatpush1.msra.mxu0 %v244
      %389 = vmatprep.subr.mxu0 0.0
      %390 = vmatpush2.msra.mxu0 0.0
      %391 = vmatprep.subr.mxu0 0.0
      %392 = vmatpush2.msra.mxu0 0.0
      %393 = vmatprep.subr.mxu0 0.0
      %394 = vmatpush2.msra.mxu0 0.0
      %395 = vmatprep.subr.mxu0 0.0
      %396 = vmatpush2.msra.mxu0 0.0
      %397 = vmatprep.subr.mxu0 0.0
      %398 = vmatpush2.msra.mxu0 0.0
      %399 = vmatprep.subr.mxu0 0.0
      %400 = vmatpush2.msra.mxu0 0.0
      %401 = vmatprep.subr.mxu0 0.0
      %402 = vmatpush2.msra.mxu0 0.0
      %403 = vmatprep.subr.mxu0 0.0
      %404 = vmatpush2.msra.mxu0 0.0
      %405 = vmatprep.subr.mxu0 0.0
      %406 = vmatpush2.msra.mxu0 0.0
      %407 = vmatprep.subr.mxu0 0.0
      %408 = vmatpush2.msra.mxu0 0.0
      %409 = vmatprep.subr.mxu0 0.0
      %410 = vmatpush2.msra.mxu0 0.0
      %411 = vmatprep.subr.mxu0 0.0
      %412 = vmatpush2.msra.mxu0 0.0
      %413 = vmatprep.subr.mxu0 0.0
      %414 = vmatpush2.msra.mxu0 0.0
      %415 = vmatprep.subr.mxu0 0.0
      %416 = vmatpush2.msra.mxu0 0.0
      %417 = vmatprep.subr.mxu0 0.0
      %418 = vmatpush2.msra.mxu0 0.0
      %419 = vmatprep.subr.mxu0 0.0
      %420 = vmatpush2.msra.mxu0 0.0
      %421 = vmatprep.mubr.f32.mxu0 0.0
      %422 = vmatmul.mubr.f32.gmra.mxu0 %v258
      %v423 = vpop.f32.mrf.mxu0
      %v424 = vadd.f32 %v254, %v423
      %v425 = vpop.f32.mrf.mxu0
      %426 = vmatprep.mubr.f32.mxu0 0.0
      %427 = vmatmul.mubr.f32.gmra.mxu0 %v261
      %v428 = vpop.f32.mrf.mxu0
      %v429 = vadd.f32 %v254, %v428
      %v430 = vpop.f32.mrf.mxu0
      %431 = vmatprep.mubr.f32.mxu0 0.0
      %432 = vmatmul.mubr.f32.gmra.mxu0 %v264
      %v433 = vpop.f32.mrf.mxu0
      %v434 = vadd.f32 %v254, %v433
      %v435 = vpop.f32.mrf.mxu0
      %436 = vmatprep.mubr.f32.mxu0 0.0
      %437 = vmatmul.mubr.f32.gmra.mxu0 %v267
      %v438 = vpop.f32.mrf.mxu0
      %v439 = vadd.f32 %v254, %v438
      %v440 = vpop.f32.mrf.mxu0
      %441 = vmatprep.mubr.f32.mxu0 0.0
      %442 = vmatmul.mubr.f32.gmra.mxu0 %v270
      %v443 = vpop.f32.mrf.mxu0
      %v444 = vadd.f32 %v254, %v443
      %v445 = vpop.f32.mrf.mxu0
      %446 = vmatprep.mubr.f32.mxu0 0.0
      %447 = vmatmul.mubr.f32.gmra.mxu0 %v273
      %v448 = vpop.f32.mrf.mxu0
      %v449 = vadd.f32 %v254, %v448
      %v450 = vpop.f32.mrf.mxu0
      %451 = vmatprep.mubr.f32.mxu0 0.0
      %452 = vmatmul.mubr.f32.gmra.mxu0 %v276
      %v453 = vpop.f32.mrf.mxu0
      %v454 = vadd.f32 %v254, %v453
      %v455 = vpop.f32.mrf.mxu0
      %456 = vmatprep.mubr.f32.mxu0 0.0
      %457 = vmatmul.mubr.f32.gmra.mxu0 %v279
      %v458 = vpop.f32.mrf.mxu0
      %v459 = vadd.f32 %v254, %v458
      %v460 = vpop.f32.mrf.mxu0
      %461 = vmatprep.mubr.f32.mxu0 0.0
      %462 = vmatmul.mubr.f32.gmra.mxu0 %v282
      %v463 = vpop.f32.mrf.mxu0
      %v464 = vadd.f32 %v254, %v463
      %v465 = vpop.f32.mrf.mxu0
      %466 = vmatprep.mubr.f32.mxu0 0.0
      %467 = vmatmul.mubr.f32.gmra.mxu0 %v285
      %v468 = vpop.f32.mrf.mxu0
      %v469 = vadd.f32 %v254, %v468
      %v470 = vpop.f32.mrf.mxu0
      %471 = vmatprep.mubr.f32.mxu0 0.0
      %472 = vmatmul.mubr.f32.gmra.mxu0 %v288
      %v473 = vpop.f32.mrf.mxu0
      %v474 = vadd.f32 %v254, %v473
      %v475 = vpop.f32.mrf.mxu0
      %476 = vmatprep.mubr.f32.mxu0 0.0
      %477 = vmatmul.mubr.f32.gmra.mxu0 %v291
      %v478 = vpop.f32.mrf.mxu0
      %v479 = vadd.f32 %v254, %v478
      %v480 = vpop.f32.mrf.mxu0
      %481 = vmatprep.mubr.f32.mxu0 0.0
      %482 = vmatmul.mubr.f32.gmra.mxu0 %v294
      %v483 = vpop.f32.mrf.mxu0
      %v484 = vadd.f32 %v254, %v483
      %v485 = vpop.f32.mrf.mxu0
      %486 = vmatprep.mubr.f32.mxu0 0.0
      %487 = vmatmul.mubr.f32.gmra.mxu0 %v297
      %v488 = vpop.f32.mrf.mxu0
      %v489 = vadd.f32 %v254, %v488
      %v490 = vpop.f32.mrf.mxu0
      %491 = vmatprep.mubr.f32.mxu0 0.0
      %492 = vmatmul.mubr.f32.gmra.mxu0 %v300
      %v493 = vpop.f32.mrf.mxu0
      %v494 = vadd.f32 %v254, %v493
      %v495 = vpop.f32.mrf.mxu0
      %496 = vmatprep.mubr.f32.mxu0 0.0
      %497 = vmatmul.mubr.f32.gmra.mxu0 %v303
      %v498 = vpop.f32.mrf.mxu0
      %v499 = vadd.f32 %v254, %v498
      %v500 = vpop.f32.mrf.mxu0
      %501 = vmatprep.mubr.f32.mxu0 0.0
      %502 = vmatmul.mubr.f32.gmra.mxu0 %v306
      %v503 = vpop.f32.mrf.mxu0
      %v504 = vadd.f32 %v254, %v503
      %v505 = vpop.f32.mrf.mxu0
      %506 = vmatprep.mubr.f32.mxu0 0.0
      %507 = vmatmul.mubr.f32.gmra.mxu0 %v309
      %v508 = vpop.f32.mrf.mxu0
      %v509 = vadd.f32 %v254, %v508
      %v510 = vpop.f32.mrf.mxu0
      %511 = vmatprep.mubr.f32.mxu0 0.0
      %512 = vmatmul.mubr.f32.gmra.mxu0 %v312
      %v513 = vpop.f32.mrf.mxu0
      %v514 = vadd.f32 %v254, %v513
      %v515 = vpop.f32.mrf.mxu0
      %516 = vmatprep.mubr.f32.mxu0 0.0
      %517 = vmatmul.mubr.f32.gmra.mxu0 %v315
      %v518 = vpop.f32.mrf.mxu0
      %v519 = vadd.f32 %v254, %v518
      %v520 = vpop.f32.mrf.mxu0
      %521 = vmatprep.mubr.f32.mxu0 0.0
      %522 = vmatmul.mubr.f32.gmra.mxu0 %v318
      %v523 = vpop.f32.mrf.mxu0
      %v524 = vadd.f32 %v254, %v523
      %v525 = vpop.f32.mrf.mxu0
      %526 = vmatprep.mubr.f32.mxu0 0.0
      %527 = vmatmul.mubr.f32.gmra.mxu0 %v321
      %v528 = vpop.f32.mrf.mxu0
      %v529 = vadd.f32 %v254, %v528
      %v530 = vpop.f32.mrf.mxu0
      %531 = vmatprep.mubr.f32.mxu0 0.0
      %532 = vmatmul.mubr.f32.gmra.mxu0 %v324
      %v533 = vpop.f32.mrf.mxu0
      %v534 = vadd.f32 %v254, %v533
      %v535 = vpop.f32.mrf.mxu0
      %536 = vmatprep.mubr.f32.mxu0 0.0
      %537 = vmatmul.mubr.f32.gmra.mxu0 %v327
      %v538 = vpop.f32.mrf.mxu0
      %v539 = vadd.f32 %v254, %v538
      %v540 = vpop.f32.mrf.mxu0
      %541 = vmatprep.mubr.f32.mxu0 0.0
      %542 = vmatmul.mubr.f32.gmra.mxu0 %v330
      %v543 = vpop.f32.mrf.mxu0
      %v544 = vadd.f32 %v254, %v543
      %v545 = vpop.f32.mrf.mxu0
      %546 = vmatprep.mubr.f32.mxu0 0.0
      %547 = vmatmul.mubr.f32.gmra.mxu0 %v333
      %v548 = vpop.f32.mrf.mxu0
      %v549 = vadd.f32 %v254, %v548
      %v550 = vpop.f32.mrf.mxu0
      %551 = vmatprep.mubr.f32.mxu0 0.0
      %552 = vmatmul.mubr.f32.gmra.mxu0 %v336
      %v553 = vpop.f32.mrf.mxu0
      %v554 = vadd.f32 %v254, %v553
      %v555 = vpop.f32.mrf.mxu0
      %556 = vmatprep.mubr.f32.mxu0 0.0
      %557 = vmatmul.mubr.f32.gmra.mxu0 %v339
      %v558 = vpop.f32.mrf.mxu0
      %v559 = vadd.f32 %v254, %v558
      %v560 = vpop.f32.mrf.mxu0
      %561 = vmatprep.mubr.f32.mxu0 0.0
      %562 = vmatmul.mubr.f32.gmra.mxu0 %v342
      %v563 = vpop.f32.mrf.mxu0
      %v564 = vadd.f32 %v254, %v563
      %v565 = vpop.f32.mrf.mxu0
      %566 = vmatprep.mubr.f32.mxu0 0.0
      %567 = vmatmul.mubr.f32.gmra.mxu0 %v345
      %v568 = vpop.f32.mrf.mxu0
      %v569 = vadd.f32 %v254, %v568
      %v570 = vpop.f32.mrf.mxu0
      %571 = vmatprep.mubr.f32.mxu0 0.0
      %572 = vmatmul.mubr.f32.gmra.mxu0 %v348
      %v573 = vpop.f32.mrf.mxu0
      %v574 = vadd.f32 %v254, %v573
      %v575 = vpop.f32.mrf.mxu0
      %576 = vmatprep.mubr.f32.mxu0 0.0
      %577 = vmatmul.mubr.f32.gmra.mxu0 %v351
      %v578 = vpop.f32.mrf.mxu0
      %v579 = vadd.f32 %v254, %v578
      %v580 = vpop.f32.mrf.mxu0
      %581 = vdwg.mxu0
      %vm582 = vcmask 261120
      %583 = vst.msk [vmem:[%s206] sm:$0xff] %vm582, %v424
      %584 = vst.msk [vmem:[%s206 + $0x8] sm:$0xff] %vm582, %v429
      %585 = vst.msk [vmem:[%s206 + $0x10] sm:$0xff] %vm582, %v434
      %586 = vst.msk [vmem:[%s206 + $0x18] sm:$0xff] %vm582, %v439
      %587 = vst.msk [vmem:[%s206 + $0x20] sm:$0xff] %vm582, %v444
      %588 = vst.msk [vmem:[%s206 + $0x28] sm:$0xff] %vm582, %v449
      %589 = vst.msk [vmem:[%s206 + $0x30] sm:$0xff] %vm582, %v454
      %590 = vst.msk [vmem:[%s206 + $0x38] sm:$0xff] %vm582, %v459
      %591 = vst.msk [vmem:[%s206 + $0x40] sm:$0xff] %vm582, %v464
      %592 = vst.msk [vmem:[%s206 + $0x48] sm:$0xff] %vm582, %v469
      %593 = vst.msk [vmem:[%s206 + $0x50] sm:$0xff] %vm582, %v474
      %594 = vst.msk [vmem:[%s206 + $0x58] sm:$0xff] %vm582, %v479
      %595 = vst.msk [vmem:[%s206 + $0x60] sm:$0xff] %vm582, %v484
      %596 = vst.msk [vmem:[%s206 + $0x68] sm:$0xff] %vm582, %v489
      %597 = vst.msk [vmem:[%s206 + $0x70] sm:$0xff] %vm582, %v494
      %598 = vst.msk [vmem:[%s206 + $0x78] sm:$0xff] %vm582, %v499
      %599 = vst.msk [vmem:[%s206 + $0x80] sm:$0xff] %vm582, %v504
      %600 = vst.msk [vmem:[%s206 + $0x88] sm:$0xff] %vm582, %v509
      %601 = vst.msk [vmem:[%s206 + $0x90] sm:$0xff] %vm582, %v514
      %602 = vst.msk [vmem:[%s206 + $0x98] sm:$0xff] %vm582, %v519
      %603 = vst.msk [vmem:[%s206 + $0xa0] sm:$0xff] %vm582, %v524
      %604 = vst.msk [vmem:[%s206 + $0xa8] sm:$0xff] %vm582, %v529
      %605 = vst.msk [vmem:[%s206 + $0xb0] sm:$0xff] %vm582, %v534
      %606 = vst.msk [vmem:[%s206 + $0xb8] sm:$0xff] %vm582, %v539
      %607 = vst.msk [vmem:[%s206 + $0xc0] sm:$0xff] %vm582, %v544
      %608 = vst.msk [vmem:[%s206 + $0xc8] sm:$0xff] %vm582, %v549
      %609 = vst.msk [vmem:[%s206 + $0xd0] sm:$0xff] %vm582, %v554
      %610 = vst.msk [vmem:[%s206 + $0xd8] sm:$0xff] %vm582, %v559
      %611 = vst.msk [vmem:[%s206 + $0xe0] sm:$0xff] %vm582, %v564
      %612 = vst.msk [vmem:[%s206 + $0xe8] sm:$0xff] %vm582, %v569
      %613 = vst.msk [vmem:[%s206 + $0xf0] sm:$0xff] %vm582, %v574
      %614 = vst.msk [vmem:[%s206 + $0xf8] sm:$0xff] %vm582, %v579
      %v615 = vlaneseq
      %v616 = vshrl.u32 %v615, 7
      %v617 = vadd.s32 %v616, 8
      %v618 = vadd.s32 %v616, 16
      %v619 = vadd.s32 %v616, 24
      %v620 = vadd.s32 %v616, 32
      %v621 = vadd.s32 %v616, 40
      %v622 = vadd.s32 %v616, 48
      %v623 = vadd.s32 %v616, 56
      %v624 = vadd.s32 %v616, 64
      %v625 = vadd.s32 %v616, 72
      %v626 = vadd.s32 %v616, 80
      %v627 = vadd.s32 %v616, 88
      %v628 = vadd.s32 %v616, 96
      %v629 = vadd.s32 %v616, 104
      %v630 = vadd.s32 %v616, 112
      %v631 = vadd.s32 %v616, 120
      %v632 = vadd.s32 %v616, 128
      %v633 = vadd.s32 %v616, 136
      %v634 = vadd.s32 %v616, 144
      %v635 = vadd.s32 %v616, 152
      %v636 = vadd.s32 %v616, 160
      %v637 = vadd.s32 %v616, 168
      %v638 = vadd.s32 %v616, 176
      %v639 = vadd.s32 %v616, 184
      %v640 = vadd.s32 %v616, 192
      %v641 = vadd.s32 %v616, 200
      %v642 = vadd.s32 %v616, 208
      %v643 = vadd.s32 %v616, 216
      %v644 = vadd.s32 %v616, 224
      %v645 = vadd.s32 %v616, 232
      %v646 = vadd.s32 %v616, 240
      %v647 = vadd.s32 %v616, 248
      %s648 = smul.u32 %s16, 256
      %v649 = vstv %s648
      %v650 = vadd.s32 %v616, %v649
      %v651 = vadd.s32 %v617, %v649
      %v652 = vadd.s32 %v618, %v649
      %v653 = vadd.s32 %v619, %v649
      %v654 = vadd.s32 %v620, %v649
      %v655 = vadd.s32 %v621, %v649
      %v656 = vadd.s32 %v622, %v649
      %v657 = vadd.s32 %v623, %v649
      %v658 = vadd.s32 %v624, %v649
      %v659 = vadd.s32 %v625, %v649
      %v660 = vadd.s32 %v626, %v649
      %v661 = vadd.s32 %v627, %v649
      %v662 = vadd.s32 %v628, %v649
      %v663 = vadd.s32 %v629, %v649
      %v664 = vadd.s32 %v630, %v649
      %v665 = vadd.s32 %v631, %v649
      %v666 = vadd.s32 %v632, %v649
      %v667 = vadd.s32 %v633, %v649
      %v668 = vadd.s32 %v634, %v649
      %v669 = vadd.s32 %v635, %v649
      %v670 = vadd.s32 %v636, %v649
      %v671 = vadd.s32 %v637, %v649
      %v672 = vadd.s32 %v638, %v649
      %v673 = vadd.s32 %v639, %v649
      %v674 = vadd.s32 %v640, %v649
      %v675 = vadd.s32 %v641, %v649
      %v676 = vadd.s32 %v642, %v649
      %v677 = vadd.s32 %v643, %v649
      %v678 = vadd.s32 %v644, %v649
      %v679 = vadd.s32 %v645, %v649
      %v680 = vadd.s32 %v646, %v649
      %v681 = vadd.s32 %v647, %v649
      %vm682 = vcmp.lt.s32.totalorder %v650, 512
      %vm683 = vcmp.lt.s32.totalorder %v651, 512
      %vm684 = vcmp.lt.s32.totalorder %v652, 512
      %vm685 = vcmp.lt.s32.totalorder %v653, 512
      %vm686 = vcmp.lt.s32.totalorder %v654, 512
      %vm687 = vcmp.lt.s32.totalorder %v655, 512
      %vm688 = vcmp.lt.s32.totalorder %v656, 512
      %vm689 = vcmp.lt.s32.totalorder %v657, 512
      %vm690 = vcmp.lt.s32.totalorder %v658, 512
      %vm691 = vcmp.lt.s32.totalorder %v659, 512
      %vm692 = vcmp.lt.s32.totalorder %v660, 512
      %vm693 = vcmp.lt.s32.totalorder %v661, 512
      %vm694 = vcmp.lt.s32.totalorder %v662, 512
      %vm695 = vcmp.lt.s32.totalorder %v663, 512
      %vm696 = vcmp.lt.s32.totalorder %v664, 512
      %vm697 = vcmp.lt.s32.totalorder %v665, 512
      %vm698 = vcmp.lt.s32.totalorder %v666, 512
      %vm699 = vcmp.lt.s32.totalorder %v667, 512
      %vm700 = vcmp.lt.s32.totalorder %v668, 512
      %vm701 = vcmp.lt.s32.totalorder %v669, 512
      %vm702 = vcmp.lt.s32.totalorder %v670, 512
      %vm703 = vcmp.lt.s32.totalorder %v671, 512
      %vm704 = vcmp.lt.s32.totalorder %v672, 512
      %vm705 = vcmp.lt.s32.totalorder %v673, 512
      %vm706 = vcmp.lt.s32.totalorder %v674, 512
      %vm707 = vcmp.lt.s32.totalorder %v675, 512
      %vm708 = vcmp.lt.s32.totalorder %v676, 512
      %vm709 = vcmp.lt.s32.totalorder %v677, 512
      %vm710 = vcmp.lt.s32.totalorder %v678, 512
      %vm711 = vcmp.lt.s32.totalorder %v679, 512
      %vm712 = vcmp.lt.s32.totalorder %v680, 512
      %vm713 = vcmp.lt.s32.totalorder %v681, 512
      %v714 = vsel %vm682, 1, 0
      %v715 = vsel %vm683, 1, 0
      %v716 = vsel %vm684, 1, 0
      %v717 = vsel %vm685, 1, 0
      %v718 = vsel %vm686, 1, 0
      %v719 = vsel %vm687, 1, 0
      %v720 = vsel %vm688, 1, 0
      %v721 = vsel %vm689, 1, 0
      %v722 = vsel %vm690, 1, 0
      %v723 = vsel %vm691, 1, 0
      %v724 = vsel %vm692, 1, 0
      %v725 = vsel %vm693, 1, 0
      %v726 = vsel %vm694, 1, 0
      %v727 = vsel %vm695, 1, 0
      %v728 = vsel %vm696, 1, 0
      %v729 = vsel %vm697, 1, 0
      %v730 = vsel %vm698, 1, 0
      %v731 = vsel %vm699, 1, 0
      %v732 = vsel %vm700, 1, 0
      %v733 = vsel %vm701, 1, 0
      %v734 = vsel %vm702, 1, 0
      %v735 = vsel %vm703, 1, 0
      %v736 = vsel %vm704, 1, 0
      %v737 = vsel %vm705, 1, 0
      %v738 = vsel %vm706, 1, 0
      %v739 = vsel %vm707, 1, 0
      %v740 = vsel %vm708, 1, 0
      %v741 = vsel %vm709, 1, 0
      %v742 = vsel %vm710, 1, 0
      %v743 = vsel %vm711, 1, 0
      %v744 = vsel %vm712, 1, 0
      %v745 = vsel %vm713, 1, 0
      %v746 = vcvt.s32.f32 %v714
      %v747 = vcvt.s32.f32 %v715
      %v748 = vcvt.s32.f32 %v716
      %v749 = vcvt.s32.f32 %v717
      %v750 = vcvt.s32.f32 %v718
      %v751 = vcvt.s32.f32 %v719
      %v752 = vcvt.s32.f32 %v720
      %v753 = vcvt.s32.f32 %v721
      %v754 = vcvt.s32.f32 %v722
      %v755 = vcvt.s32.f32 %v723
      %v756 = vcvt.s32.f32 %v724
      %v757 = vcvt.s32.f32 %v725
      %v758 = vcvt.s32.f32 %v726
      %v759 = vcvt.s32.f32 %v727
      %v760 = vcvt.s32.f32 %v728
      %v761 = vcvt.s32.f32 %v729
      %v762 = vcvt.s32.f32 %v730
      %v763 = vcvt.s32.f32 %v731
      %v764 = vcvt.s32.f32 %v732
      %v765 = vcvt.s32.f32 %v733
      %v766 = vcvt.s32.f32 %v734
      %v767 = vcvt.s32.f32 %v735
      %v768 = vcvt.s32.f32 %v736
      %v769 = vcvt.s32.f32 %v737
      %v770 = vcvt.s32.f32 %v738
      %v771 = vcvt.s32.f32 %v739
      %v772 = vcvt.s32.f32 %v740
      %v773 = vcvt.s32.f32 %v741
      %v774 = vcvt.s32.f32 %v742
      %v775 = vcvt.s32.f32 %v743
      %v776 = vcvt.s32.f32 %v744
      %v777 = vcvt.s32.f32 %v745
      %v778 = vmul.f32 %v424, %v746
      %v779 = vmul.f32 %v429, %v747
      %v780 = vmul.f32 %v434, %v748
      %v781 = vmul.f32 %v439, %v749
      %v782 = vmul.f32 %v444, %v750
      %v783 = vmul.f32 %v449, %v751
      %v784 = vmul.f32 %v454, %v752
      %v785 = vmul.f32 %v459, %v753
      %v786 = vmul.f32 %v464, %v754
      %v787 = vmul.f32 %v469, %v755
      %v788 = vmul.f32 %v474, %v756
      %v789 = vmul.f32 %v479, %v757
      %v790 = vmul.f32 %v484, %v758
      %v791 = vmul.f32 %v489, %v759
      %v792 = vmul.f32 %v494, %v760
      %v793 = vmul.f32 %v499, %v761
      %v794 = vmul.f32 %v504, %v762
      %v795 = vmul.f32 %v509, %v763
      %v796 = vmul.f32 %v514, %v764
      %v797 = vmul.f32 %v519, %v765
      %v798 = vmul.f32 %v524, %v766
      %v799 = vmul.f32 %v529, %v767
      %v800 = vmul.f32 %v534, %v768
      %v801 = vmul.f32 %v539, %v769
      %v802 = vmul.f32 %v544, %v770
      %v803 = vmul.f32 %v549, %v771
      %v804 = vmul.f32 %v554, %v772
      %v805 = vmul.f32 %v559, %v773
      %v806 = vmul.f32 %v564, %v774
      %v807 = vmul.f32 %v569, %v775
      %v808 = vmul.f32 %v574, %v776
      %v809 = vmul.f32 %v579, %v777
      %v810 = vsel %vm582, %v778, 0.0
      %v811 = vsel %vm582, %v779, 0.0
      %v812 = vadd.f32 %v810, %v811
      %v813 = vsel %vm582, %v780, 0.0
      %v814 = vadd.f32 %v812, %v813
      %v815 = vsel %vm582, %v781, 0.0
      %v816 = vadd.f32 %v814, %v815
      %v817 = vsel %vm582, %v782, 0.0
      %v818 = vadd.f32 %v816, %v817
      %v819 = vsel %vm582, %v783, 0.0
      %v820 = vadd.f32 %v818, %v819
      %v821 = vsel %vm582, %v784, 0.0
      %v822 = vadd.f32 %v820, %v821
      %v823 = vsel %vm582, %v785, 0.0
      %v824 = vadd.f32 %v822, %v823
      %v825 = vsel %vm582, %v786, 0.0
      %v826 = vadd.f32 %v824, %v825
      %v827 = vsel %vm582, %v787, 0.0
      %v828 = vadd.f32 %v826, %v827
      %v829 = vsel %vm582, %v788, 0.0
      %v830 = vadd.f32 %v828, %v829
      %v831 = vsel %vm582, %v789, 0.0
      %v832 = vadd.f32 %v830, %v831
      %v833 = vsel %vm582, %v790, 0.0
      %v834 = vadd.f32 %v832, %v833
      %v835 = vsel %vm582, %v791, 0.0
      %v836 = vadd.f32 %v834, %v835
      %v837 = vsel %vm582, %v792, 0.0
      %v838 = vadd.f32 %v836, %v837
      %v839 = vsel %vm582, %v793, 0.0
      %v840 = vadd.f32 %v838, %v839
      %v841 = vsel %vm582, %v794, 0.0
      %v842 = vadd.f32 %v840, %v841
      %v843 = vsel %vm582, %v795, 0.0
      %v844 = vadd.f32 %v842, %v843
      %v845 = vsel %vm582, %v796, 0.0
      %v846 = vadd.f32 %v844, %v845
      %v847 = vsel %vm582, %v797, 0.0
      %v848 = vadd.f32 %v846, %v847
      %v849 = vsel %vm582, %v798, 0.0
      %v850 = vadd.f32 %v848, %v849
      %v851 = vsel %vm582, %v799, 0.0
      %v852 = vadd.f32 %v850, %v851
      %v853 = vsel %vm582, %v800, 0.0
      %v854 = vadd.f32 %v852, %v853
      %v855 = vsel %vm582, %v801, 0.0
      %v856 = vadd.f32 %v854, %v855
      %v857 = vsel %vm582, %v802, 0.0
      %v858 = vadd.f32 %v856, %v857
      %v859 = vsel %vm582, %v803, 0.0
      %v860 = vadd.f32 %v858, %v859
      %v861 = vsel %vm582, %v804, 0.0
      %v862 = vadd.f32 %v860, %v861
      %v863 = vsel %vm582, %v805, 0.0
      %v864 = vadd.f32 %v862, %v863
      %v865 = vsel %vm582, %v806, 0.0
      %v866 = vadd.f32 %v864, %v865
      %v867 = vsel %vm582, %v807, 0.0
      %v868 = vadd.f32 %v866, %v867
      %v869 = vsel %vm582, %v808, 0.0
      %v870 = vadd.f32 %v868, %v869
      %v871 = vsel %vm582, %v809, 0.0
      %v872 = vadd.f32 %v870, %v871
      %v873 = vrot.slane %v872, 4
      %v874 = vadd.f32 %v872, %v873
      %v875 = vrot.slane %v874, 2
      %v876 = vadd.f32 %v874, %v875
      %v877 = vrot.slane %v876, 1
      %v878 = vadd.f32 %v876, %v877
      %v879 = vmul.f32 %v778, %v424
      %v880 = vmul.f32 %v779, %v429
      %v881 = vmul.f32 %v780, %v434
      %v882 = vmul.f32 %v781, %v439
      %v883 = vmul.f32 %v782, %v444
      %v884 = vmul.f32 %v783, %v449
      %v885 = vmul.f32 %v784, %v454
      %v886 = vmul.f32 %v785, %v459
      %v887 = vmul.f32 %v786, %v464
      %v888 = vmul.f32 %v787, %v469
      %v889 = vmul.f32 %v788, %v474
      %v890 = vmul.f32 %v789, %v479
      %v891 = vmul.f32 %v790, %v484
      %v892 = vmul.f32 %v791, %v489
      %v893 = vmul.f32 %v792, %v494
      %v894 = vmul.f32 %v793, %v499
      %v895 = vmul.f32 %v794, %v504
      %v896 = vmul.f32 %v795, %v509
      %v897 = vmul.f32 %v796, %v514
      %v898 = vmul.f32 %v797, %v519
      %v899 = vmul.f32 %v798, %v524
      %v900 = vmul.f32 %v799, %v529
      %v901 = vmul.f32 %v800, %v534
      %v902 = vmul.f32 %v801, %v539
      %v903 = vmul.f32 %v802, %v544
      %v904 = vmul.f32 %v803, %v549
      %v905 = vmul.f32 %v804, %v554
      %v906 = vmul.f32 %v805, %v559
      %v907 = vmul.f32 %v806, %v564
      %v908 = vmul.f32 %v807, %v569
      %v909 = vmul.f32 %v808, %v574
      %v910 = vmul.f32 %v809, %v579
      %v911 = vsel %vm582, %v879, 0.0
      %v912 = vsel %vm582, %v880, 0.0
      %v913 = vadd.f32 %v911, %v912
      %v914 = vsel %vm582, %v881, 0.0
      %v915 = vadd.f32 %v913, %v914
      %v916 = vsel %vm582, %v882, 0.0
      %v917 = vadd.f32 %v915, %v916
      %v918 = vsel %vm582, %v883, 0.0
      %v919 = vadd.f32 %v917, %v918
      %v920 = vsel %vm582, %v884, 0.0
      %v921 = vadd.f32 %v919, %v920
      %v922 = vsel %vm582, %v885, 0.0
      %v923 = vadd.f32 %v921, %v922
      %v924 = vsel %vm582, %v886, 0.0
      %v925 = vadd.f32 %v923, %v924
      %v926 = vsel %vm582, %v887, 0.0
      %v927 = vadd.f32 %v925, %v926
      %v928 = vsel %vm582, %v888, 0.0
      %v929 = vadd.f32 %v927, %v928
      %v930 = vsel %vm582, %v889, 0.0
      %v931 = vadd.f32 %v929, %v930
      %v932 = vsel %vm582, %v890, 0.0
      %v933 = vadd.f32 %v931, %v932
      %v934 = vsel %vm582, %v891, 0.0
      %v935 = vadd.f32 %v933, %v934
      %v936 = vsel %vm582, %v892, 0.0
      %v937 = vadd.f32 %v935, %v936
      %v938 = vsel %vm582, %v893, 0.0
      %v939 = vadd.f32 %v937, %v938
      %v940 = vsel %vm582, %v894, 0.0
      %v941 = vadd.f32 %v939, %v940
      %v942 = vsel %vm582, %v895, 0.0
      %v943 = vadd.f32 %v941, %v942
      %v944 = vsel %vm582, %v896, 0.0
      %v945 = vadd.f32 %v943, %v944
      %v946 = vsel %vm582, %v897, 0.0
      %v947 = vadd.f32 %v945, %v946
      %v948 = vsel %vm582, %v898, 0.0
      %v949 = vadd.f32 %v947, %v948
      %v950 = vsel %vm582, %v899, 0.0
      %v951 = vadd.f32 %v949, %v950
      %v952 = vsel %vm582, %v900, 0.0
      %v953 = vadd.f32 %v951, %v952
      %v954 = vsel %vm582, %v901, 0.0
      %v955 = vadd.f32 %v953, %v954
      %v956 = vsel %vm582, %v902, 0.0
      %v957 = vadd.f32 %v955, %v956
      %v958 = vsel %vm582, %v903, 0.0
      %v959 = vadd.f32 %v957, %v958
      %v960 = vsel %vm582, %v904, 0.0
      %v961 = vadd.f32 %v959, %v960
      %v962 = vsel %vm582, %v905, 0.0
      %v963 = vadd.f32 %v961, %v962
      %v964 = vsel %vm582, %v906, 0.0
      %v965 = vadd.f32 %v963, %v964
      %v966 = vsel %vm582, %v907, 0.0
      %v967 = vadd.f32 %v965, %v966
      %v968 = vsel %vm582, %v908, 0.0
      %v969 = vadd.f32 %v967, %v968
      %v970 = vsel %vm582, %v909, 0.0
      %v971 = vadd.f32 %v969, %v970
      %v972 = vsel %vm582, %v910, 0.0
      %v973 = vadd.f32 %v971, %v972
      %v974 = vrot.slane %v973, 4
      %v975 = vadd.f32 %v973, %v974
      %v976 = vrot.slane %v975, 2
      %v977 = vadd.f32 %v975, %v976
      %v978 = vrot.slane %v977, 1
      %v979 = vadd.f32 %v977, %v978
      %vm980 = vcmask 1040384
      %v981 = vsel %vm980, %v878, %v979
      %vm982 = vcmask 254976
      %983 = vst.msk [vmem:[%s211] sm:$0x3] %vm982, %v981
      %s984 = smul.u32 32, %s16
      %p985 = scmp.lt.s32.totalorder %s984, 63
      %s986 = scalar_select %p985, %s984, 63
      %s987 = smul.addr %s986, 8
      %s988 = scalar_lea.vmem %s3, %s987
      %p989 = scmp.lt.s32.totalorder %s16, 1
      %s990 = scalar_select %p989, %s16, 1
      %s991 = smul.addr %s990, 2
      %s992 = scalar_lea.vmem %s4, %s991
      // Predicated region
      $region33: #{conv_with_norms_forward.2} parent=31 // pred_check
        %p993 = pneg %p102
      $region34: #{conv_with_norms_forward.2} parent=31 // pred_check_branch
        %995 = sbr.rel (%p993) target = $region36
      $region35: #{conv_with_norms_forward.2} parent=31 // pred_region
        %s996 = smul.u32 32, %s16
      $region36: #{conv_with_norms_forward.2} parent=31 // pred_fallthru
        _
      // Predicated region
      $region37: #{conv_with_norms_forward.2} parent=31 // pred_check
        %p997 = pneg %p128
      $region38: #{conv_with_norms_forward.2} parent=31 // pred_check_branch
        %999 = sbr.rel (%p997) target = $region40
      $region39: #{conv_with_norms_forward.2} parent=31 // pred_region
        _
      $region40: #{conv_with_norms_forward.2} parent=31 // pred_fallthru
        _
    $region32: #{conv_with_norms_forward.2} parent=5 // pred_fallthru
      _
    %p1000 = scmp.le.s32.totalorder 2, %s11
    // Predicated region
    $region41: #{conv_with_norms_forward.2} parent=5 // pred_check
      %p1001 = pneg %p1000
    $region42: #{conv_with_norms_forward.2} parent=5 // pred_check_branch
      %1003 = sbr.rel (%p1001) target = $region44
    $region43: #{conv_with_norms_forward.2} parent=5 // pred_region
      %s1004 = ssub.s32 %s11, 2
      // Predicated region
      $region45: #{conv_with_norms_forward.2} parent=43 // pred_check
        %p1005 = pneg %p108
      $region46: #{conv_with_norms_forward.2} parent=43 // pred_check_branch
        %1007 = sbr.rel (%p1005) target = $region48
      $region47: #{conv_with_norms_forward.2} parent=43 // pred_region
        %s1008 = smul.u32 32, %s17
        %p1009 = scmp.lt.s32.totalorder %s1008, 63
        %s1010 = scalar_select %p1009, %s1008, 63
        %s1011 = smul.addr %s1010, 8
        %s1012 = scalar_lea.vmem %s3, %s1011
      $region48: #{conv_with_norms_forward.2} parent=43 // pred_fallthru
        _
      // Predicated region
      $region49: #{conv_with_norms_forward.2} parent=43 // pred_check
        %p1013 = pneg %p134
      $region50: #{conv_with_norms_forward.2} parent=43 // pred_check_branch
        %1015 = sbr.rel (%p1013) target = $region52
      $region51: #{conv_with_norms_forward.2} parent=43 // pred_region
        %p1016 = scmp.lt.s32.totalorder %s17, 1
        %s1017 = scalar_select %p1016, %s17, 1
        %s1018 = smul.addr %s1017, 2
        %s1019 = scalar_lea.vmem %s4, %s1018
      $region52: #{conv_with_norms_forward.2} parent=43 // pred_fallthru
        _
    $region44: #{conv_with_norms_forward.2} parent=5 // pred_fallthru
      _
  $region6: #{conv_with_norms_forward.2} parent=0 // loop_footer
    %s15 = sadd.s32 1, %s11
  $region7: #{conv_with_norms_forward.2} parent=0 // loop_footer_branch
    %10 = sbr.rel target = $region3
  $region8: #{conv_with_norms_forward.2} parent=0 // loop_exit
    _

</llo_original>
